<compile_context>
chip_gen: v7x
topology: tpu7x:2x2x1
jax: 0.10.0
libtpu: 0.0.40
codegen_flags: <defaults>
</compile_context>

<pallas_src>
import jax
import jax.numpy as jnp
from jax.experimental import pallas as pl
from jax.experimental.pallas import tpu as pltpu


# ------------------------------ kernel helpers ------------------------------ #
def _bn_relu(y, gamma, beta, eps=1e-5):
    """nn.BatchNorm1d (training-mode batch stats, biased var) + ReLU.

    y: (B, C, V) -- per-channel stats over (B, V).  gamma/beta: (C, 1).
    Reductions decomposed into single-axis sums (lane reduce then leading reduce).
    """
    B, _, V = y.shape
    n = float(B * V)
    s = jnp.sum(jnp.sum(y, axis=2, keepdims=True), axis=0, keepdims=True)
    mean = s / n
    d = y - mean
    var = jnp.sum(jnp.sum(d * d, axis=2, keepdims=True), axis=0, keepdims=True) / n
    yn = d * jax.lax.rsqrt(var + eps)
    return jnp.maximum(yn * gamma + beta, 0.0)


# ------------------------------- fused kernel ------------------------------- #
def _s2_fused_kernel(x_ref, l1t_ref, l0t_ref, pool_ref, w1_ref, w2_ref,
                     g1_ref, b1_ref, g2_ref, b2_ref,
                     out_ref,
                     z1_ref, y1_ref, z2_ref, y2_ref):
    """Whole s2_model forward for the full batch, everything VMEM-resident.

    x_ref:    (B, Cin, V1)    input, lane-dense (V last)
    l1t_ref:  (V1, V1)        fine laplacian, transposed
    l0t_ref:  (V0, V0)        coarse laplacian, transposed
    pool_ref: (V1, V0)        HEALPix avg-pool matrix (factor 4)
    w1_ref:   (C1, K1*Cin)    cheb weights, channel-mix folded
    w2_ref:   (C2, K2*C1)
    g*/b*:    (C, 1)          BatchNorm affine params
    out_ref:  (B, C2)
    z*_ref:   scratch for the stacked [T_0 x; ...; T_{K-1} x]
    y*_ref:   scratch holding per-layer conv outputs (needed for batch-stat BN)
    """
    B, c_in, _ = x_ref.shape
    c1, kc1 = w1_ref.shape
    c2, kc2 = w2_ref.shape
    K1 = kc1 // c_in
    K2 = kc2 // c1

    l1t = l1t_ref[...]
    l0t = l0t_ref[...]
    pool = pool_ref[...]
    w1 = w1_ref[...]
    w2 = w2_ref[...]

    def cheb_stack(x0, lt, z_ref, cin, K):
        """Write [T_0(L)x; T_1(L)x; ...] (transposed layout) into z_ref (K*cin, V)."""
        z_ref[0:cin, :] = x0
        xkm1, xkm2 = x0, x0
        for k in range(1, K):
            if k == 1:
                xk = jnp.dot(x0, lt, preferred_element_type=jnp.float32)
            else:
                # x_k = 2 L x_{k-1} - x_{k-2}; the 2.0 stays in-kernel (one tiny VPU
                # mul on a (C,V) tile) -- cheaper than DMA-ing an extra 2*L^T operand.
                xk = 2.0 * jnp.dot(xkm1, lt, preferred_element_type=jnp.float32) - xkm2
            z_ref[k * cin:(k + 1) * cin, :] = xk
            xkm2, xkm1 = xkm1, xk

    # ---- sconv1: Chebyshev conv on lap1, K channel matmuls folded into one ----
    for b in range(B):
        x0 = x_ref[b].astype(jnp.float32)                       # (Cin, V1)
        cheb_stack(x0, l1t, z1_ref, c_in, K1)
        y1_ref[b] = jnp.dot(w1, z1_ref[...], preferred_element_type=jnp.float32)

    y1 = _bn_relu(y1_ref[...], g1_ref[...], b1_ref[...])        # (B, C1, V1)

    # ---- sconv2: HEALPix avg-pool (matmul) then Chebyshev conv on lap0 ----
    for b in range(B):
        xp = jnp.dot(y1[b], pool, preferred_element_type=jnp.float32)   # (C1, V0)
        cheb_stack(xp, l0t, z2_ref, c1, K2)
        y2_ref[b] = jnp.dot(w2, z2_ref[...], preferred_element_type=jnp.float32)

    y2 = _bn_relu(y2_ref[...], g2_ref[...], b2_ref[...])        # (B, C2, V0)

    # ---- final: mean over the vertex (lane) dim -> (B, C2) ----
    out_ref[...] = jnp.mean(y2, axis=2)


# --------------------------------- wrapper ---------------------------------- #
def s2_model_forward(x, params):
    """x: (B, V1, Cin) -> (B, Cout2). Matches the PyTorch s2_model forward."""
    B, V1, c_in = x.shape
    w1, w2 = params["w1"], params["w2"]
    K1, _, c1 = w1.shape
    K2, _, c2 = w2.shape
    lap1, lap0 = params["lap1"], params["lap0"]
    V0 = lap0.shape[0]
    factor = V1 // V0                                  # HEALPix pooling factor (4)

    # Layout plumbing (tiny, static): make V the lane dimension everywhere.
    x_t = jnp.transpose(x, (0, 2, 1))                  # (B, Cin, V1)
    l1t = jnp.transpose(lap1)                          # X @ L^T == (L @ X^T)^T
    l0t = jnp.transpose(lap0)
    w1cat = jnp.transpose(w1.reshape(K1 * c_in, c1))   # (C1, K1*Cin), cols ordered (k, ci)
    w2cat = jnp.transpose(w2.reshape(K2 * c1, c2))     # (C2, K2*C1)
    pool = jnp.repeat(jnp.eye(V0, dtype=x.dtype), factor, axis=0) / factor   # (V1, V0)
    g1 = params["g1"].reshape(c1, 1)
    b1 = params["b1"].reshape(c1, 1)
    g2 = params["g2"].reshape(c2, 1)
    b2 = params["b2"].reshape(c2, 1)

    vmem_spec = lambda: pl.BlockSpec(memory_space=pltpu.MemorySpace.VMEM)
    return pl.pallas_call(
        _s2_fused_kernel,
        out_shape=jax.ShapeDtypeStruct((B, c2), jnp.float32),
        in_specs=[vmem_spec() for _ in range(10)],
        out_specs=vmem_spec(),
        scratch_shapes=[
            pltpu.VMEM((K1 * c_in, V1), jnp.float32),   # stacked T_k(L1) x
            pltpu.VMEM((B, c1, V1), jnp.float32),       # conv1 out (held for BN stats)
            pltpu.VMEM((K2 * c1, V0), jnp.float32),     # stacked T_k(L0) x
            pltpu.VMEM((B, c2, V0), jnp.float32),       # conv2 out (held for BN stats)
        ],
    )(x_t, l1t, l0t, pool, w1cat, w2cat, g1, b1, g2, b2)


# ----------------------------- synthetic problem ----------------------------- #
def make_laplacian(key, V):
    """Deterministic synthetic rescaled symmetric laplacian with spectrum ~[-1, 1]."""
    a = jax.random.uniform(key, (V, V), dtype=jnp.float32)
    a = 0.5 * (a + a.T)
    d = jnp.sum(a, axis=1)
    d_inv_sqrt = 1.0 / jnp.sqrt(d)
    L = jnp.eye(V, dtype=jnp.float32) - d_inv_sqrt[:, None] * a * d_inv_sqrt[None, :]
    # rescale_laplacian: 2*L/lmax - I  (lmax=2 bound for the normalized laplacian)
    return L - jnp.eye(V, dtype=jnp.float32)


if __name__ == "__main__":
    key = jax.random.PRNGKey(0)
    k_lap1, k_lap0, k_w1, k_w2, k_x = jax.random.split(key, 5)

    # Small HEALPix-like setup: fine grid V1 = 192 (nside=4), coarse V0 = 48 (nside=2)
    B = 2
    V1, V0 = 192, 48
    n_channel = [4, 8, 16]
    kernel_size = [3, 3]

    lap1 = make_laplacian(k_lap1, V1)   # laps[1] -> used by sconv1
    lap0 = make_laplacian(k_lap0, V0)   # laps[0] -> used by sconv2 (after pooling)

    params = {
        "lap1": lap1,
        "lap0": lap0,
        # ChebConv weights: (kernel_size, in_channels, out_channels)
        "w1": jax.random.normal(k_w1, (kernel_size[0], n_channel[0], n_channel[1]),
                                dtype=jnp.float32) * 0.1,
        "w2": jax.random.normal(k_w2, (kernel_size[1], n_channel[1], n_channel[2]),
                                dtype=jnp.float32) * 0.1,
        # BatchNorm1d default init: weight=1, bias=0
        "g1": jnp.ones((n_channel[1],), jnp.float32),
        "b1": jnp.zeros((n_channel[1],), jnp.float32),
        "g2": jnp.ones((n_channel[2],), jnp.float32),
        "b2": jnp.zeros((n_channel[2],), jnp.float32),
    }

    x = jax.random.normal(k_x, (B, V1, n_channel[0]), dtype=jnp.float32)

    out = jax.jit(s2_model_forward)(x, params)
    out = jax.block_until_ready(out)
    assert out.shape == (B, n_channel[2]), out.shape
    assert jnp.all(jnp.isfinite(out))
    print("KERNEL_OK")
</pallas_src>

<mosaic_0001>
module attributes {stable_mosaic.version = 11 : i64} {
  func.func @_s2_fused_kernel(%arg0: memref<2x4x192xf32, #tpu.memory_space<vmem>>, %arg1: memref<192x192xf32, #tpu.memory_space<vmem>>, %arg2: memref<48x48xf32, #tpu.memory_space<vmem>>, %arg3: memref<192x48xf32, #tpu.memory_space<vmem>>, %arg4: memref<8x12xf32, #tpu.memory_space<vmem>>, %arg5: memref<16x24xf32, #tpu.memory_space<vmem>>, %arg6: memref<8x1xf32, #tpu.memory_space<vmem>>, %arg7: memref<8x1xf32, #tpu.memory_space<vmem>>, %arg8: memref<16x1xf32, #tpu.memory_space<vmem>>, %arg9: memref<16x1xf32, #tpu.memory_space<vmem>>, %arg10: memref<2x16xf32, #tpu.memory_space<vmem>>, %arg11: memref<12x192xf32, #tpu.memory_space<vmem>>, %arg12: memref<2x8x192xf32, #tpu.memory_space<vmem>>, %arg13: memref<24x48xf32, #tpu.memory_space<vmem>>, %arg14: memref<2x16x48xf32, #tpu.memory_space<vmem>>) attributes {dimension_semantics = [], scalar_prefetch = 0 : i64, scratch_operands = 4 : i64, tpu.core_type = #tpu.core_type<tc>} {
    %c0 = arith.constant 0 : index
    %c0_0 = arith.constant 0 : index
    %0 = vector.load %arg1[%c0, %c0_0] : memref<192x192xf32, #tpu.memory_space<vmem>>, vector<192x192xf32>
    %c0_1 = arith.constant 0 : index
    %c0_2 = arith.constant 0 : index
    %1 = vector.load %arg2[%c0_1, %c0_2] : memref<48x48xf32, #tpu.memory_space<vmem>>, vector<48x48xf32>
    %c0_3 = arith.constant 0 : index
    %c0_4 = arith.constant 0 : index
    %2 = vector.load %arg3[%c0_3, %c0_4] : memref<192x48xf32, #tpu.memory_space<vmem>>, vector<192x48xf32>
    %c0_5 = arith.constant 0 : index
    %c0_6 = arith.constant 0 : index
    %3 = vector.load %arg4[%c0_5, %c0_6] : memref<8x12xf32, #tpu.memory_space<vmem>>, vector<8x12xf32>
    %c0_7 = arith.constant 0 : index
    %c0_8 = arith.constant 0 : index
    %4 = vector.load %arg5[%c0_7, %c0_8] : memref<16x24xf32, #tpu.memory_space<vmem>>, vector<16x24xf32>
    %c0_9 = arith.constant 0 : index
    %c0_10 = arith.constant 0 : index
    %c0_11 = arith.constant 0 : index
    %5 = vector.load %arg0[%c0_9, %c0_10, %c0_11] : memref<2x4x192xf32, #tpu.memory_space<vmem>>, vector<1x4x192xf32>
    %6 = vector.shape_cast %5 : vector<1x4x192xf32> to vector<4x192xf32>
    %c0_12 = arith.constant 0 : index
    %c0_13 = arith.constant 0 : index
    %7 = vector.load %arg11[%c0_12, %c0_13] : memref<12x192xf32, #tpu.memory_space<vmem>>, vector<4x192xf32>
    tpu.vector_store %arg11[%c0_12, %c0_13], %6 {strides = array<i32>} : memref<12x192xf32, #tpu.memory_space<vmem>>, vector<4x192xf32>,
    %cst = arith.constant dense<0.000000e+00> : vector<4x192xf32>
    %8 = tpu.matmul %6, %0, %cst {dimension_numbers = #tpu.dot_dimension_numbers<[1], [0], [0], [1], [0, 0, 1, 1], [], []>} : vector<4x192xf32>, vector<192x192xf32>, vector<4x192xf32> -> vector<4x192xf32>
    %c4 = arith.constant 4 : index
    %c0_14 = arith.constant 0 : index
    %9 = vector.load %arg11[%c4, %c0_14] : memref<12x192xf32, #tpu.memory_space<vmem>>, vector<4x192xf32>
    tpu.vector_store %arg11[%c4, %c0_14], %8 {strides = array<i32>} : memref<12x192xf32, #tpu.memory_space<vmem>>, vector<4x192xf32>,
    %cst_15 = arith.constant dense<0.000000e+00> : vector<4x192xf32>
    %10 = tpu.matmul %8, %0, %cst_15 {dimension_numbers = #tpu.dot_dimension_numbers<[1], [0], [0], [1], [0, 0, 1, 1], [], []>} : vector<4x192xf32>, vector<192x192xf32>, vector<4x192xf32> -> vector<4x192xf32>
    %cst_16 = arith.constant 2.000000e+00 : f32
    %11 = vector.broadcast %cst_16 : f32 to vector<4x192xf32>
    %12 = arith.mulf %11, %10 : vector<4x192xf32>
    %13 = arith.subf %12, %6 : vector<4x192xf32>
    %c8 = arith.constant 8 : index
    %c0_17 = arith.constant 0 : index
    %14 = vector.load %arg11[%c8, %c0_17] : memref<12x192xf32, #tpu.memory_space<vmem>>, vector<4x192xf32>
    tpu.vector_store %arg11[%c8, %c0_17], %13 {strides = array<i32>} : memref<12x192xf32, #tpu.memory_space<vmem>>, vector<4x192xf32>,
    %c0_18 = arith.constant 0 : index
    %c0_19 = arith.constant 0 : index
    %15 = vector.load %arg11[%c0_18, %c0_19] : memref<12x192xf32, #tpu.memory_space<vmem>>, vector<12x192xf32>
    %cst_20 = arith.constant dense<0.000000e+00> : vector<8x192xf32>
    %16 = tpu.matmul %3, %15, %cst_20 {dimension_numbers = #tpu.dot_dimension_numbers<[1], [0], [0], [1], [0, 0, 1, 1], [], []>} : vector<8x12xf32>, vector<12x192xf32>, vector<8x192xf32> -> vector<8x192xf32>
    %c0_21 = arith.constant 0 : index
    %c0_22 = arith.constant 0 : index
    %c0_23 = arith.constant 0 : index
    %17 = vector.load %arg12[%c0_21, %c0_22, %c0_23] : memref<2x8x192xf32, #tpu.memory_space<vmem>>, vector<1x8x192xf32>
    %18 = vector.shape_cast %17 : vector<1x8x192xf32> to vector<8x192xf32>
    %19 = vector.shape_cast %16 : vector<8x192xf32> to vector<1x8x192xf32>
    tpu.vector_store %arg12[%c0_21, %c0_22, %c0_23], %19 {strides = array<i32>} : memref<2x8x192xf32, #tpu.memory_space<vmem>>, vector<1x8x192xf32>,
    %c1 = arith.constant 1 : index
    %c0_24 = arith.constant 0 : index
    %c0_25 = arith.constant 0 : index
    %20 = vector.load %arg0[%c1, %c0_24, %c0_25] : memref<2x4x192xf32, #tpu.memory_space<vmem>>, vector<1x4x192xf32>
    %21 = vector.shape_cast %20 : vector<1x4x192xf32> to vector<4x192xf32>
    %c0_26 = arith.constant 0 : index
    %c0_27 = arith.constant 0 : index
    %22 = vector.load %arg11[%c0_26, %c0_27] : memref<12x192xf32, #tpu.memory_space<vmem>>, vector<4x192xf32>
    tpu.vector_store %arg11[%c0_26, %c0_27], %21 {strides = array<i32>} : memref<12x192xf32, #tpu.memory_space<vmem>>, vector<4x192xf32>,
    %cst_28 = arith.constant dense<0.000000e+00> : vector<4x192xf32>
    %23 = tpu.matmul %21, %0, %cst_28 {dimension_numbers = #tpu.dot_dimension_numbers<[1], [0], [0], [1], [0, 0, 1, 1], [], []>} : vector<4x192xf32>, vector<192x192xf32>, vector<4x192xf32> -> vector<4x192xf32>
    %c4_29 = arith.constant 4 : index
    %c0_30 = arith.constant 0 : index
    %24 = vector.load %arg11[%c4_29, %c0_30] : memref<12x192xf32, #tpu.memory_space<vmem>>, vector<4x192xf32>
    tpu.vector_store %arg11[%c4_29, %c0_30], %23 {strides = array<i32>} : memref<12x192xf32, #tpu.memory_space<vmem>>, vector<4x192xf32>,
    %cst_31 = arith.constant dense<0.000000e+00> : vector<4x192xf32>
    %25 = tpu.matmul %23, %0, %cst_31 {dimension_numbers = #tpu.dot_dimension_numbers<[1], [0], [0], [1], [0, 0, 1, 1], [], []>} : vector<4x192xf32>, vector<192x192xf32>, vector<4x192xf32> -> vector<4x192xf32>
    %cst_32 = arith.constant 2.000000e+00 : f32
    %26 = vector.broadcast %cst_32 : f32 to vector<4x192xf32>
    %27 = arith.mulf %26, %25 : vector<4x192xf32>
    %28 = arith.subf %27, %21 : vector<4x192xf32>
    %c8_33 = arith.constant 8 : index
    %c0_34 = arith.constant 0 : index
    %29 = vector.load %arg11[%c8_33, %c0_34] : memref<12x192xf32, #tpu.memory_space<vmem>>, vector<4x192xf32>
    tpu.vector_store %arg11[%c8_33, %c0_34], %28 {strides = array<i32>} : memref<12x192xf32, #tpu.memory_space<vmem>>, vector<4x192xf32>,
    %c0_35 = arith.constant 0 : index
    %c0_36 = arith.constant 0 : index
    %30 = vector.load %arg11[%c0_35, %c0_36] : memref<12x192xf32, #tpu.memory_space<vmem>>, vector<12x192xf32>
    %cst_37 = arith.constant dense<0.000000e+00> : vector<8x192xf32>
    %31 = tpu.matmul %3, %30, %cst_37 {dimension_numbers = #tpu.dot_dimension_numbers<[1], [0], [0], [1], [0, 0, 1, 1], [], []>} : vector<8x12xf32>, vector<12x192xf32>, vector<8x192xf32> -> vector<8x192xf32>
    %c1_38 = arith.constant 1 : index
    %c0_39 = arith.constant 0 : index
    %c0_40 = arith.constant 0 : index
    %32 = vector.load %arg12[%c1_38, %c0_39, %c0_40] : memref<2x8x192xf32, #tpu.memory_space<vmem>>, vector<1x8x192xf32>
    %33 = vector.shape_cast %32 : vector<1x8x192xf32> to vector<8x192xf32>
    %34 = vector.shape_cast %31 : vector<8x192xf32> to vector<1x8x192xf32>
    tpu.vector_store %arg12[%c1_38, %c0_39, %c0_40], %34 {strides = array<i32>} : memref<2x8x192xf32, #tpu.memory_space<vmem>>, vector<1x8x192xf32>,
    %c0_41 = arith.constant 0 : index
    %c0_42 = arith.constant 0 : index
    %c0_43 = arith.constant 0 : index
    %35 = vector.load %arg12[%c0_41, %c0_42, %c0_43] : memref<2x8x192xf32, #tpu.memory_space<vmem>>, vector<2x8x192xf32>
    %c0_44 = arith.constant 0 : index
    %c0_45 = arith.constant 0 : index
    %36 = vector.load %arg6[%c0_44, %c0_45] : memref<8x1xf32, #tpu.memory_space<vmem>>, vector<8x1xf32>
    %c0_46 = arith.constant 0 : index
    %c0_47 = arith.constant 0 : index
    %37 = vector.load %arg7[%c0_46, %c0_47] : memref<8x1xf32, #tpu.memory_space<vmem>>, vector<8x1xf32>
    %cst_48 = arith.constant dense<0.000000e+00> : vector<2x8xf32>
    %38 = vector.multi_reduction <add>, %35, %cst_48 [2] : vector<2x8x192xf32> to vector<2x8xf32>
    %39 = vector.shape_cast %38 : vector<2x8xf32> to vector<2x8x1xf32>
    %cst_49 = arith.constant dense<0.000000e+00> : vector<8x1xf32>
    %40 = vector.multi_reduction <add>, %39, %cst_49 [0] : vector<2x8x1xf32> to vector<8x1xf32>
    %41 = vector.shape_cast %40 : vector<8x1xf32> to vector<1x8x1xf32>
    %cst_50 = arith.constant 3.840000e+02 : f32
    %42 = vector.broadcast %cst_50 : f32 to vector<1x8x1xf32>
    %43 = arith.divf %41, %42 : vector<1x8x1xf32>
    %44 = vector.broadcast %43 : vector<1x8x1xf32> to vector<2x8x192xf32>
    %45 = arith.subf %35, %44 : vector<2x8x192xf32>
    %46 = arith.mulf %45, %45 : vector<2x8x192xf32>
    %cst_51 = arith.constant dense<0.000000e+00> : vector<2x8xf32>
    %47 = vector.multi_reduction <add>, %46, %cst_51 [2] : vector<2x8x192xf32> to vector<2x8xf32>
    %48 = vector.shape_cast %47 : vector<2x8xf32> to vector<2x8x1xf32>
    %cst_52 = arith.constant dense<0.000000e+00> : vector<8x1xf32>
    %49 = vector.multi_reduction <add>, %48, %cst_52 [0] : vector<2x8x1xf32> to vector<8x1xf32>
    %50 = vector.shape_cast %49 : vector<8x1xf32> to vector<1x8x1xf32>
    %cst_53 = arith.constant 3.840000e+02 : f32
    %51 = vector.broadcast %cst_53 : f32 to vector<1x8x1xf32>
    %52 = arith.divf %50, %51 : vector<1x8x1xf32>
    %cst_54 = arith.constant 9.99999974E-6 : f32
    %53 = vector.broadcast %cst_54 : f32 to vector<1x8x1xf32>
    %54 = arith.addf %52, %53 : vector<1x8x1xf32>
    %55 = math.rsqrt %54 : vector<1x8x1xf32>
    %56 = vector.broadcast %55 : vector<1x8x1xf32> to vector<2x8x192xf32>
    %57 = arith.mulf %45, %56 : vector<2x8x192xf32>
    %58 = vector.shape_cast %36 : vector<8x1xf32> to vector<1x8x1xf32>
    %59 = vector.broadcast %58 : vector<1x8x1xf32> to vector<2x8x192xf32>
    %60 = arith.mulf %57, %59 : vector<2x8x192xf32>
    %61 = vector.shape_cast %37 : vector<8x1xf32> to vector<1x8x1xf32>
    %62 = vector.broadcast %61 : vector<1x8x1xf32> to vector<2x8x192xf32>
    %63 = arith.addf %60, %62 : vector<2x8x192xf32>
    %cst_55 = arith.constant 0.000000e+00 : f32
    %64 = vector.broadcast %cst_55 : f32 to vector<2x8x192xf32>
    %65 = arith.maximumf %63, %64 : vector<2x8x192xf32>
    %66 = vector.extract_strided_slice %65 {offsets = [0, 0, 0], sizes = [1, 8, 192], strides = [1, 1, 1]} : vector<2x8x192xf32> to vector<1x8x192xf32>
    %67 = vector.shape_cast %66 : vector<1x8x192xf32> to vector<8x192xf32>
    %cst_56 = arith.constant dense<0.000000e+00> : vector<8x48xf32>
    %68 = tpu.matmul %67, %2, %cst_56 {dimension_numbers = #tpu.dot_dimension_numbers<[1], [0], [0], [1], [0, 0, 1, 1], [], []>} : vector<8x192xf32>, vector<192x48xf32>, vector<8x48xf32> -> vector<8x48xf32>
    %c0_57 = arith.constant 0 : index
    %c0_58 = arith.constant 0 : index
    %69 = vector.load %arg13[%c0_57, %c0_58] : memref<24x48xf32, #tpu.memory_space<vmem>>, vector<8x48xf32>
    tpu.vector_store %arg13[%c0_57, %c0_58], %68 {strides = array<i32>} : memref<24x48xf32, #tpu.memory_space<vmem>>, vector<8x48xf32>,
    %cst_59 = arith.constant dense<0.000000e+00> : vector<8x48xf32>
    %70 = tpu.matmul %68, %1, %cst_59 {dimension_numbers = #tpu.dot_dimension_numbers<[1], [0], [0], [1], [0, 0, 1, 1], [], []>} : vector<8x48xf32>, vector<48x48xf32>, vector<8x48xf32> -> vector<8x48xf32>
    %c8_60 = arith.constant 8 : index
    %c0_61 = arith.constant 0 : index
    %71 = vector.load %arg13[%c8_60, %c0_61] : memref<24x48xf32, #tpu.memory_space<vmem>>, vector<8x48xf32>
    tpu.vector_store %arg13[%c8_60, %c0_61], %70 {strides = array<i32>} : memref<24x48xf32, #tpu.memory_space<vmem>>, vector<8x48xf32>,
    %cst_62 = arith.constant dense<0.000000e+00> : vector<8x48xf32>
    %72 = tpu.matmul %70, %1, %cst_62 {dimension_numbers = #tpu.dot_dimension_numbers<[1], [0], [0], [1], [0, 0, 1, 1], [], []>} : vector<8x48xf32>, vector<48x48xf32>, vector<8x48xf32> -> vector<8x48xf32>
    %cst_63 = arith.constant 2.000000e+00 : f32
    %73 = vector.broadcast %cst_63 : f32 to vector<8x48xf32>
    %74 = arith.mulf %73, %72 : vector<8x48xf32>
    %75 = arith.subf %74, %68 : vector<8x48xf32>
    %c16 = arith.constant 16 : index
    %c0_64 = arith.constant 0 : index
    %76 = vector.load %arg13[%c16, %c0_64] : memref<24x48xf32, #tpu.memory_space<vmem>>, vector<8x48xf32>
    tpu.vector_store %arg13[%c16, %c0_64], %75 {strides = array<i32>} : memref<24x48xf32, #tpu.memory_space<vmem>>, vector<8x48xf32>,
    %c0_65 = arith.constant 0 : index
    %c0_66 = arith.constant 0 : index
    %77 = vector.load %arg13[%c0_65, %c0_66] : memref<24x48xf32, #tpu.memory_space<vmem>>, vector<24x48xf32>
    %cst_67 = arith.constant dense<0.000000e+00> : vector<16x48xf32>
    %78 = tpu.matmul %4, %77, %cst_67 {dimension_numbers = #tpu.dot_dimension_numbers<[1], [0], [0], [1], [0, 0, 1, 1], [], []>} : vector<16x24xf32>, vector<24x48xf32>, vector<16x48xf32> -> vector<16x48xf32>
    %c0_68 = arith.constant 0 : index
    %c0_69 = arith.constant 0 : index
    %c0_70 = arith.constant 0 : index
    %79 = vector.load %arg14[%c0_68, %c0_69, %c0_70] : memref<2x16x48xf32, #tpu.memory_space<vmem>>, vector<1x16x48xf32>
    %80 = vector.shape_cast %79 : vector<1x16x48xf32> to vector<16x48xf32>
    %81 = vector.shape_cast %78 : vector<16x48xf32> to vector<1x16x48xf32>
    tpu.vector_store %arg14[%c0_68, %c0_69, %c0_70], %81 {strides = array<i32>} : memref<2x16x48xf32, #tpu.memory_space<vmem>>, vector<1x16x48xf32>,
    %82 = vector.extract_strided_slice %65 {offsets = [1, 0, 0], sizes = [1, 8, 192], strides = [1, 1, 1]} : vector<2x8x192xf32> to vector<1x8x192xf32>
    %83 = vector.shape_cast %82 : vector<1x8x192xf32> to vector<8x192xf32>
    %cst_71 = arith.constant dense<0.000000e+00> : vector<8x48xf32>
    %84 = tpu.matmul %83, %2, %cst_71 {dimension_numbers = #tpu.dot_dimension_numbers<[1], [0], [0], [1], [0, 0, 1, 1], [], []>} : vector<8x192xf32>, vector<192x48xf32>, vector<8x48xf32> -> vector<8x48xf32>
    %c0_72 = arith.constant 0 : index
    %c0_73 = arith.constant 0 : index
    %85 = vector.load %arg13[%c0_72, %c0_73] : memref<24x48xf32, #tpu.memory_space<vmem>>, vector<8x48xf32>
    tpu.vector_store %arg13[%c0_72, %c0_73], %84 {strides = array<i32>} : memref<24x48xf32, #tpu.memory_space<vmem>>, vector<8x48xf32>,
    %cst_74 = arith.constant dense<0.000000e+00> : vector<8x48xf32>
    %86 = tpu.matmul %84, %1, %cst_74 {dimension_numbers = #tpu.dot_dimension_numbers<[1], [0], [0], [1], [0, 0, 1, 1], [], []>} : vector<8x48xf32>, vector<48x48xf32>, vector<8x48xf32> -> vector<8x48xf32>
    %c8_75 = arith.constant 8 : index
    %c0_76 = arith.constant 0 : index
    %87 = vector.load %arg13[%c8_75, %c0_76] : memref<24x48xf32, #tpu.memory_space<vmem>>, vector<8x48xf32>
    tpu.vector_store %arg13[%c8_75, %c0_76], %86 {strides = array<i32>} : memref<24x48xf32, #tpu.memory_space<vmem>>, vector<8x48xf32>,
    %cst_77 = arith.constant dense<0.000000e+00> : vector<8x48xf32>
    %88 = tpu.matmul %86, %1, %cst_77 {dimension_numbers = #tpu.dot_dimension_numbers<[1], [0], [0], [1], [0, 0, 1, 1], [], []>} : vector<8x48xf32>, vector<48x48xf32>, vector<8x48xf32> -> vector<8x48xf32>
    %cst_78 = arith.constant 2.000000e+00 : f32
    %89 = vector.broadcast %cst_78 : f32 to vector<8x48xf32>
    %90 = arith.mulf %89, %88 : vector<8x48xf32>
    %91 = arith.subf %90, %84 : vector<8x48xf32>
    %c16_79 = arith.constant 16 : index
    %c0_80 = arith.constant 0 : index
    %92 = vector.load %arg13[%c16_79, %c0_80] : memref<24x48xf32, #tpu.memory_space<vmem>>, vector<8x48xf32>
    tpu.vector_store %arg13[%c16_79, %c0_80], %91 {strides = array<i32>} : memref<24x48xf32, #tpu.memory_space<vmem>>, vector<8x48xf32>,
    %c0_81 = arith.constant 0 : index
    %c0_82 = arith.constant 0 : index
    %93 = vector.load %arg13[%c0_81, %c0_82] : memref<24x48xf32, #tpu.memory_space<vmem>>, vector<24x48xf32>
    %cst_83 = arith.constant dense<0.000000e+00> : vector<16x48xf32>
    %94 = tpu.matmul %4, %93, %cst_83 {dimension_numbers = #tpu.dot_dimension_numbers<[1], [0], [0], [1], [0, 0, 1, 1], [], []>} : vector<16x24xf32>, vector<24x48xf32>, vector<16x48xf32> -> vector<16x48xf32>
    %c1_84 = arith.constant 1 : index
    %c0_85 = arith.constant 0 : index
    %c0_86 = arith.constant 0 : index
    %95 = vector.load %arg14[%c1_84, %c0_85, %c0_86] : memref<2x16x48xf32, #tpu.memory_space<vmem>>, vector<1x16x48xf32>
    %96 = vector.shape_cast %95 : vector<1x16x48xf32> to vector<16x48xf32>
    %97 = vector.shape_cast %94 : vector<16x48xf32> to vector<1x16x48xf32>
    tpu.vector_store %arg14[%c1_84, %c0_85, %c0_86], %97 {strides = array<i32>} : memref<2x16x48xf32, #tpu.memory_space<vmem>>, vector<1x16x48xf32>,
    %c0_87 = arith.constant 0 : index
    %c0_88 = arith.constant 0 : index
    %c0_89 = arith.constant 0 : index
    %98 = vector.load %arg14[%c0_87, %c0_88, %c0_89] : memref<2x16x48xf32, #tpu.memory_space<vmem>>, vector<2x16x48xf32>
    %c0_90 = arith.constant 0 : index
    %c0_91 = arith.constant 0 : index
    %99 = vector.load %arg8[%c0_90, %c0_91] : memref<16x1xf32, #tpu.memory_space<vmem>>, vector<16x1xf32>
    %c0_92 = arith.constant 0 : index
    %c0_93 = arith.constant 0 : index
    %100 = vector.load %arg9[%c0_92, %c0_93] : memref<16x1xf32, #tpu.memory_space<vmem>>, vector<16x1xf32>
    %cst_94 = arith.constant dense<0.000000e+00> : vector<2x16xf32>
    %101 = vector.multi_reduction <add>, %98, %cst_94 [2] : vector<2x16x48xf32> to vector<2x16xf32>
    %102 = vector.shape_cast %101 : vector<2x16xf32> to vector<2x16x1xf32>
    %cst_95 = arith.constant dense<0.000000e+00> : vector<16x1xf32>
    %103 = vector.multi_reduction <add>, %102, %cst_95 [0] : vector<2x16x1xf32> to vector<16x1xf32>
    %104 = vector.shape_cast %103 : vector<16x1xf32> to vector<1x16x1xf32>
    %cst_96 = arith.constant 9.600000e+01 : f32
    %105 = vector.broadcast %cst_96 : f32 to vector<1x16x1xf32>
    %106 = arith.divf %104, %105 : vector<1x16x1xf32>
    %107 = vector.broadcast %106 : vector<1x16x1xf32> to vector<2x16x48xf32>
    %108 = arith.subf %98, %107 : vector<2x16x48xf32>
    %109 = arith.mulf %108, %108 : vector<2x16x48xf32>
    %cst_97 = arith.constant dense<0.000000e+00> : vector<2x16xf32>
    %110 = vector.multi_reduction <add>, %109, %cst_97 [2] : vector<2x16x48xf32> to vector<2x16xf32>
    %111 = vector.shape_cast %110 : vector<2x16xf32> to vector<2x16x1xf32>
    %cst_98 = arith.constant dense<0.000000e+00> : vector<16x1xf32>
    %112 = vector.multi_reduction <add>, %111, %cst_98 [0] : vector<2x16x1xf32> to vector<16x1xf32>
    %113 = vector.shape_cast %112 : vector<16x1xf32> to vector<1x16x1xf32>
    %cst_99 = arith.constant 9.600000e+01 : f32
    %114 = vector.broadcast %cst_99 : f32 to vector<1x16x1xf32>
    %115 = arith.divf %113, %114 : vector<1x16x1xf32>
    %cst_100 = arith.constant 9.99999974E-6 : f32
    %116 = vector.broadcast %cst_100 : f32 to vector<1x16x1xf32>
    %117 = arith.addf %115, %116 : vector<1x16x1xf32>
    %118 = math.rsqrt %117 : vector<1x16x1xf32>
    %119 = vector.broadcast %118 : vector<1x16x1xf32> to vector<2x16x48xf32>
    %120 = arith.mulf %108, %119 : vector<2x16x48xf32>
    %121 = vector.shape_cast %99 : vector<16x1xf32> to vector<1x16x1xf32>
    %122 = vector.broadcast %121 : vector<1x16x1xf32> to vector<2x16x48xf32>
    %123 = arith.mulf %120, %122 : vector<2x16x48xf32>
    %124 = vector.shape_cast %100 : vector<16x1xf32> to vector<1x16x1xf32>
    %125 = vector.broadcast %124 : vector<1x16x1xf32> to vector<2x16x48xf32>
    %126 = arith.addf %123, %125 : vector<2x16x48xf32>
    %cst_101 = arith.constant 0.000000e+00 : f32
    %127 = vector.broadcast %cst_101 : f32 to vector<2x16x48xf32>
    %128 = arith.maximumf %126, %127 : vector<2x16x48xf32>
    %cst_102 = arith.constant dense<0.000000e+00> : vector<2x16xf32>
    %129 = vector.multi_reduction <add>, %128, %cst_102 [2] : vector<2x16x48xf32> to vector<2x16xf32>
    %cst_103 = arith.constant 4.800000e+01 : f32
    %130 = vector.broadcast %cst_103 : f32 to vector<2x16xf32>
    %131 = arith.divf %129, %130 : vector<2x16xf32>
    %c0_104 = arith.constant 0 : index
    %c0_105 = arith.constant 0 : index
    %132 = vector.load %arg10[%c0_104, %c0_105] : memref<2x16xf32, #tpu.memory_space<vmem>>, vector<2x16xf32>
    tpu.vector_store %arg10[%c0_104, %c0_105], %131 {strides = array<i32>} : memref<2x16xf32, #tpu.memory_space<vmem>>, vector<2x16xf32>,
    return
  }
}

</mosaic_0001>

<llo_original>
// kernel: s2_model_forward.1
$region0: #{s2_model_forward.1}
  #allocation0 [shape = 'u32[]', space=smem, size = 0x4, offset = 0x4, fixed_abs, tag = 'smem constant byte address 0x4 - core index']
  #allocation1 [shape = 'u32[144,128]{1,0:T(1,128)}', space=vmem, size = 0x12000, scoped, tag = 'internal scratch']
  #allocation2 [shape = 'f32[12,192]{1,0:T(8,128)}', space=vmem, size = 0x4000, scoped, tag = 'scratch operand']
  #allocation3 [shape = 'f32[2,8,192]{2,1,0:T(8,128)}', space=vmem, size = 0x4000, scoped, tag = 'scratch operand']
  #allocation4 [shape = 'f32[24,48]{1,0:T(8,128)}', space=vmem, size = 0x3000, scoped, tag = 'scratch operand']
  #allocation5 [shape = 'f32[2,16,48]{2,1,0:T(8,128)}', space=vmem, size = 0x4000, scoped, tag = 'scratch operand']
  %s0 = inlined_call_operand.vmem [shape: f32[2,4,192], index: 0, kind: input, shape index: {}]
  %s1 = inlined_call_operand.vmem [shape: f32[192,192], index: 1, kind: input, shape index: {}]
  %s2 = inlined_call_operand.vmem [shape: f32[48,48], index: 2, kind: input, shape index: {}]
  %s3 = inlined_call_operand.vmem [shape: f32[192,48], index: 3, kind: input, shape index: {}]
  %s4 = inlined_call_operand.vmem [shape: f32[8,12], index: 4, kind: input, shape index: {}]
  %s5 = inlined_call_operand.vmem [shape: f32[16,24], index: 5, kind: input, shape index: {}]
  %s6 = inlined_call_operand.vmem [shape: f32[8,1], index: 6, kind: input, shape index: {}]
  %s7 = inlined_call_operand.vmem [shape: f32[8,1], index: 7, kind: input, shape index: {}]
  %s8 = inlined_call_operand.vmem [shape: f32[16,1], index: 8, kind: input, shape index: {}]
  %s9 = inlined_call_operand.vmem [shape: f32[16,1], index: 9, kind: input, shape index: {}]
  %s10 = inlined_call_operand.hbm [shape: f32[2,16], index: 10, kind: output, shape index: {}]
  %s11 = sld [smem:[#allocation0]]
  $region50: #{s2_model_forward.1} parent=0
    _
  %s13 = ssub.s32 1, %s11
  %s14 = scalar_select 0, %s13, %s11
  $region1: #{s2_model_forward.1} parent=0
    #allocation6 [shape = 'u8[1024]{0}', space=vmem, size = 0x400, scoped, tag = 'output window, operand 0, single buffered']
    #allocation7 [shape = 's32[1]{0}', space=sflag, size = 0x4, scoped, tag = 'scoped memory for s2_model_forward.1']
    %15 = vsyncpa [#allocation7], 0
    // Predicated region
    $region2: #{s2_model_forward.1} parent=1 // pred_check
      _
    $region3: #{s2_model_forward.1} parent=1 // pred_check_branch
      %17 = sbr.rel (0) target = $region5
    $region4: #{s2_model_forward.1} parent=1 // pred_region
      _
    $region5: #{s2_model_forward.1} parent=1 // pred_fallthru
      _
    // Predicated region
    $region6: #{s2_model_forward.1} parent=1 // pred_check
      _
    $region7: #{s2_model_forward.1} parent=1 // pred_check_branch
      %19 = sbr.rel (0) target = $region9
    $region8: #{s2_model_forward.1} parent=1 // pred_region
      _
    $region9: #{s2_model_forward.1} parent=1 // pred_fallthru
      _
    // Predicated region
    $region10: #{s2_model_forward.1} parent=1 // pred_check
      _
    $region11: #{s2_model_forward.1} parent=1 // pred_check_branch
      %21 = sbr.rel (0) target = $region13
    $region12: #{s2_model_forward.1} parent=1 // pred_region
      _
    $region13: #{s2_model_forward.1} parent=1 // pred_fallthru
      _
    // Predicated region
    $region14: #{s2_model_forward.1} parent=1 // pred_check
      _
    $region15: #{s2_model_forward.1} parent=1 // pred_check_branch
      %23 = sbr.rel (0) target = $region17
    $region16: #{s2_model_forward.1} parent=1 // pred_region
      _
    $region17: #{s2_model_forward.1} parent=1 // pred_fallthru
      _
    // Predicated region
    $region18: #{s2_model_forward.1} parent=1 // pred_check
      _
    $region19: #{s2_model_forward.1} parent=1 // pred_check_branch
      %25 = sbr.rel (0) target = $region21
    $region20: #{s2_model_forward.1} parent=1 // pred_region
      _
    $region21: #{s2_model_forward.1} parent=1 // pred_fallthru
      _
    // Predicated region
    $region22: #{s2_model_forward.1} parent=1 // pred_check
      _
    $region23: #{s2_model_forward.1} parent=1 // pred_check_branch
      %27 = sbr.rel (0) target = $region25
    $region24: #{s2_model_forward.1} parent=1 // pred_region
      _
    $region25: #{s2_model_forward.1} parent=1 // pred_fallthru
      _
    // Predicated region
    $region26: #{s2_model_forward.1} parent=1 // pred_check
      _
    $region27: #{s2_model_forward.1} parent=1 // pred_check_branch
      %29 = sbr.rel (0) target = $region29
    $region28: #{s2_model_forward.1} parent=1 // pred_region
      _
    $region29: #{s2_model_forward.1} parent=1 // pred_fallthru
      _
    // Predicated region
    $region30: #{s2_model_forward.1} parent=1 // pred_check
      _
    $region31: #{s2_model_forward.1} parent=1 // pred_check_branch
      %31 = sbr.rel (0) target = $region33
    $region32: #{s2_model_forward.1} parent=1 // pred_region
      _
    $region33: #{s2_model_forward.1} parent=1 // pred_fallthru
      _
    // Predicated region
    $region34: #{s2_model_forward.1} parent=1 // pred_check
      _
    $region35: #{s2_model_forward.1} parent=1 // pred_check_branch
      %33 = sbr.rel (0) target = $region37
    $region36: #{s2_model_forward.1} parent=1 // pred_region
      _
    $region37: #{s2_model_forward.1} parent=1 // pred_fallthru
      _
    // Predicated region
    $region38: #{s2_model_forward.1} parent=1 // pred_check
      _
    $region39: #{s2_model_forward.1} parent=1 // pred_check_branch
      %35 = sbr.rel (0) target = $region41
    $region40: #{s2_model_forward.1} parent=1 // pred_region
      _
    $region41: #{s2_model_forward.1} parent=1 // pred_fallthru
      _
    %v36 = vld [vmem:[%s1] sm:$0xff]
    %v37 = vld [vmem:[%s1 + $0x8] sm:$0xff]
    %v38 = vld [vmem:[%s1 + $0x10] sm:$0xff]
    %v39 = vld [vmem:[%s1 + $0x18] sm:$0xff]
    %v40 = vld [vmem:[%s1 + $0x20] sm:$0xff]
    %v41 = vld [vmem:[%s1 + $0x28] sm:$0xff]
    %v42 = vld [vmem:[%s1 + $0x30] sm:$0xff]
    %v43 = vld [vmem:[%s1 + $0x38] sm:$0xff]
    %v44 = vld [vmem:[%s1 + $0x40] sm:$0xff]
    %v45 = vld [vmem:[%s1 + $0x48] sm:$0xff]
    %v46 = vld [vmem:[%s1 + $0x50] sm:$0xff]
    %v47 = vld [vmem:[%s1 + $0x58] sm:$0xff]
    %v48 = vld [vmem:[%s1 + $0x60] sm:$0xff]
    %v49 = vld [vmem:[%s1 + $0x68] sm:$0xff]
    %v50 = vld [vmem:[%s1 + $0x70] sm:$0xff]
    %v51 = vld [vmem:[%s1 + $0x78] sm:$0xff]
    %v52 = vld [vmem:[%s1 + $0x80] sm:$0xff]
    %v53 = vld [vmem:[%s1 + $0x88] sm:$0xff]
    %v54 = vld [vmem:[%s1 + $0x90] sm:$0xff]
    %v55 = vld [vmem:[%s1 + $0x98] sm:$0xff]
    %v56 = vld [vmem:[%s1 + $0xa0] sm:$0xff]
    %v57 = vld [vmem:[%s1 + $0xa8] sm:$0xff]
    %v58 = vld [vmem:[%s1 + $0xb0] sm:$0xff]
    %v59 = vld [vmem:[%s1 + $0xb8] sm:$0xff]
    %v60 = vld [vmem:[%s1 + $0xc0] sm:$0xff]
    %v61 = vld [vmem:[%s1 + $0xc8] sm:$0xff]
    %v62 = vld [vmem:[%s1 + $0xd0] sm:$0xff]
    %v63 = vld [vmem:[%s1 + $0xd8] sm:$0xff]
    %v64 = vld [vmem:[%s1 + $0xe0] sm:$0xff]
    %v65 = vld [vmem:[%s1 + $0xe8] sm:$0xff]
    %v66 = vld [vmem:[%s1 + $0xf0] sm:$0xff]
    %v67 = vld [vmem:[%s1 + $0xf8] sm:$0xff]
    %v68 = vld [vmem:[%s1 + $0x100] sm:$0xff]
    %v69 = vld [vmem:[%s1 + $0x108] sm:$0xff]
    %v70 = vld [vmem:[%s1 + $0x110] sm:$0xff]
    %v71 = vld [vmem:[%s1 + $0x118] sm:$0xff]
    %v72 = vld [vmem:[%s1 + $0x120] sm:$0xff]
    %v73 = vld [vmem:[%s1 + $0x128] sm:$0xff]
    %v74 = vld [vmem:[%s1 + $0x130] sm:$0xff]
    %v75 = vld [vmem:[%s1 + $0x138] sm:$0xff]
    %v76 = vld [vmem:[%s1 + $0x140] sm:$0xff]
    %v77 = vld [vmem:[%s1 + $0x148] sm:$0xff]
    %v78 = vld [vmem:[%s1 + $0x150] sm:$0xff]
    %v79 = vld [vmem:[%s1 + $0x158] sm:$0xff]
    %v80 = vld [vmem:[%s1 + $0x160] sm:$0xff]
    %v81 = vld [vmem:[%s1 + $0x168] sm:$0xff]
    %v82 = vld [vmem:[%s1 + $0x170] sm:$0xff]
    %v83 = vld [vmem:[%s1 + $0x178] sm:$0xff]
    %v84 = vld [vmem:[%s2] sm:$0xff]
    %v85 = vld [vmem:[%s2 + $0x8] sm:$0xff]
    %v86 = vld [vmem:[%s2 + $0x10] sm:$0xff]
    %v87 = vld [vmem:[%s2 + $0x18] sm:$0xff]
    %v88 = vld [vmem:[%s2 + $0x20] sm:$0xff]
    %v89 = vld [vmem:[%s2 + $0x28] sm:$0xff]
    %v90 = vld [vmem:[%s3] sm:$0xff]
    %v91 = vld [vmem:[%s3 + $0x8] sm:$0xff]
    %v92 = vld [vmem:[%s3 + $0x10] sm:$0xff]
    %v93 = vld [vmem:[%s3 + $0x18] sm:$0xff]
    %v94 = vld [vmem:[%s3 + $0x20] sm:$0xff]
    %v95 = vld [vmem:[%s3 + $0x28] sm:$0xff]
    %v96 = vld [vmem:[%s3 + $0x30] sm:$0xff]
    %v97 = vld [vmem:[%s3 + $0x38] sm:$0xff]
    %v98 = vld [vmem:[%s3 + $0x40] sm:$0xff]
    %v99 = vld [vmem:[%s3 + $0x48] sm:$0xff]
    %v100 = vld [vmem:[%s3 + $0x50] sm:$0xff]
    %v101 = vld [vmem:[%s3 + $0x58] sm:$0xff]
    %v102 = vld [vmem:[%s3 + $0x60] sm:$0xff]
    %v103 = vld [vmem:[%s3 + $0x68] sm:$0xff]
    %v104 = vld [vmem:[%s3 + $0x70] sm:$0xff]
    %v105 = vld [vmem:[%s3 + $0x78] sm:$0xff]
    %v106 = vld [vmem:[%s3 + $0x80] sm:$0xff]
    %v107 = vld [vmem:[%s3 + $0x88] sm:$0xff]
    %v108 = vld [vmem:[%s3 + $0x90] sm:$0xff]
    %v109 = vld [vmem:[%s3 + $0x98] sm:$0xff]
    %v110 = vld [vmem:[%s3 + $0xa0] sm:$0xff]
    %v111 = vld [vmem:[%s3 + $0xa8] sm:$0xff]
    %v112 = vld [vmem:[%s3 + $0xb0] sm:$0xff]
    %v113 = vld [vmem:[%s3 + $0xb8] sm:$0xff]
    %v114 = vld [vmem:[%s4] sm:$0xff]
    %v115 = vld [vmem:[%s5] sm:$0xff]
    %v116 = vld [vmem:[%s5 + $0x8] sm:$0xff]
    %v117 = vld [vmem:[%s0] sm:$0xff]
    %v119 = vcombine.high %v117, %v117
    %121 = vst [vmem:[#allocation2] sm:$0xf] %v117
    %vm122 = vcmask 519168
    %123 = vst.msk [vmem:[#allocation2 + $0x8] sm:$0xf] %vm122, %v119
    %vm124 = vcmask 523264
    %v125 = vsel %vm124, %v119, 0
    %127 = vmatprep.subr.mxu0 %v37
    %128 = vmatpush1.msra.mxu0 %v36
    %129 = vmatprep.subr.mxu0 %v39
    %130 = vmatpush1.msra.mxu0 %v38
    %131 = vmatprep.subr.mxu0 %v41
    %132 = vmatpush1.msra.mxu0 %v40
    %133 = vmatprep.subr.mxu0 %v43
    %134 = vmatpush1.msra.mxu0 %v42
    %135 = vmatprep.subr.mxu0 %v45
    %136 = vmatpush1.msra.mxu0 %v44
    %137 = vmatprep.subr.mxu0 %v47
    %138 = vmatpush1.msra.mxu0 %v46
    %139 = vmatprep.subr.mxu0 %v49
    %140 = vmatpush1.msra.mxu0 %v48
    %141 = vmatprep.subr.mxu0 %v51
    %142 = vmatpush1.msra.mxu0 %v50
    %143 = vmatprep.subr.mxu0 %v53
    %144 = vmatpush1.msra.mxu0 %v52
    %145 = vmatprep.subr.mxu0 %v55
    %146 = vmatpush1.msra.mxu0 %v54
    %147 = vmatprep.subr.mxu0 %v57
    %148 = vmatpush1.msra.mxu0 %v56
    %149 = vmatprep.subr.mxu0 %v59
    %150 = vmatpush1.msra.mxu0 %v58
    %151 = vmatprep.subr.mxu0 %v61
    %152 = vmatpush1.msra.mxu0 %v60
    %153 = vmatprep.subr.mxu0 %v63
    %154 = vmatpush1.msra.mxu0 %v62
    %155 = vmatprep.subr.mxu0 %v65
    %156 = vmatpush1.msra.mxu0 %v64
    %157 = vmatprep.subr.mxu0 %v67
    %158 = vmatpush1.msra.mxu0 %v66
    %159 = vmatprep.subr.mxu0 %v69
    %160 = vmatpush1.msra.mxu0 %v68
    %161 = vmatprep.subr.mxu0 %v71
    %162 = vmatpush1.msra.mxu0 %v70
    %163 = vmatprep.subr.mxu0 %v73
    %164 = vmatpush1.msra.mxu0 %v72
    %165 = vmatprep.subr.mxu0 %v75
    %166 = vmatpush1.msra.mxu0 %v74
    %167 = vmatprep.subr.mxu0 %v77
    %168 = vmatpush1.msra.mxu0 %v76
    %169 = vmatprep.subr.mxu0 %v79
    %170 = vmatpush1.msra.mxu0 %v78
    %171 = vmatprep.subr.mxu0 %v81
    %172 = vmatpush1.msra.mxu0 %v80
    %173 = vmatprep.subr.mxu0 %v83
    %174 = vmatpush1.msra.mxu0 %v82
    %175 = vmatprep.subr.mxu0 0.0
    %176 = vmatpush1.msra.mxu0 0.0
    %177 = vmatprep.subr.mxu0 0.0
    %178 = vmatpush1.msra.mxu0 0.0
    %179 = vmatprep.subr.mxu0 0.0
    %180 = vmatpush1.msra.mxu0 0.0
    %181 = vmatprep.subr.mxu0 0.0
    %182 = vmatpush1.msra.mxu0 0.0
    %183 = vmatprep.subr.mxu0 0.0
    %184 = vmatpush1.msra.mxu0 0.0
    %185 = vmatprep.subr.mxu0 0.0
    %186 = vmatpush1.msra.mxu0 0.0
    %187 = vmatprep.subr.mxu0 0.0
    %188 = vmatpush1.msra.mxu0 0.0
    %189 = vmatprep.subr.mxu0 0.0
    %190 = vmatpush1.msra.mxu0 0.0
    %191 = vmatprep.mubr.f32.mxu0 %v125
    %192 = vmatmul.mubr.f32.gmra.mrb[0].mxu0 %v117
    %v193 = vpop.f32.mrb[0].mxu0
    %v194 = vadd.f32 0.0, %v193
    %v195 = vpop.f32.mrb[0].mxu0
    %v196 = vadd.f32 0.0, %v195
    %197 = vdwg.mxu0
    %v200 = vrot.slane %v194, 4
    %v201 = vrot.slane %v196, 4
    %204 = vst [vmem:[#allocation2] sm:$0xf0] %v200
    %vm205 = vcmask 523268
    %206 = vst.msk [vmem:[#allocation2 + $0x8] sm:$0xf0] %vm205, %v201
    %v207 = vsel %vm124, %v196, 0
    %209 = vmatprep.subr.mxu0 %v37
    %210 = vmatpush1.msra.mxu0 %v36
    %211 = vmatprep.subr.mxu0 %v39
    %212 = vmatpush1.msra.mxu0 %v38
    %213 = vmatprep.subr.mxu0 %v41
    %214 = vmatpush1.msra.mxu0 %v40
    %215 = vmatprep.subr.mxu0 %v43
    %216 = vmatpush1.msra.mxu0 %v42
    %217 = vmatprep.subr.mxu0 %v45
    %218 = vmatpush1.msra.mxu0 %v44
    %219 = vmatprep.subr.mxu0 %v47
    %220 = vmatpush1.msra.mxu0 %v46
    %221 = vmatprep.subr.mxu0 %v49
    %222 = vmatpush1.msra.mxu0 %v48
    %223 = vmatprep.subr.mxu0 %v51
    %224 = vmatpush1.msra.mxu0 %v50
    %225 = vmatprep.subr.mxu0 %v53
    %226 = vmatpush1.msra.mxu0 %v52
    %227 = vmatprep.subr.mxu0 %v55
    %228 = vmatpush1.msra.mxu0 %v54
    %229 = vmatprep.subr.mxu0 %v57
    %230 = vmatpush1.msra.mxu0 %v56
    %231 = vmatprep.subr.mxu0 %v59
    %232 = vmatpush1.msra.mxu0 %v58
    %233 = vmatprep.subr.mxu0 %v61
    %234 = vmatpush1.msra.mxu0 %v60
    %235 = vmatprep.subr.mxu0 %v63
    %236 = vmatpush1.msra.mxu0 %v62
    %237 = vmatprep.subr.mxu0 %v65
    %238 = vmatpush1.msra.mxu0 %v64
    %239 = vmatprep.subr.mxu0 %v67
    %240 = vmatpush1.msra.mxu0 %v66
    %241 = vmatprep.subr.mxu0 %v69
    %242 = vmatpush1.msra.mxu0 %v68
    %243 = vmatprep.subr.mxu0 %v71
    %244 = vmatpush1.msra.mxu0 %v70
    %245 = vmatprep.subr.mxu0 %v73
    %246 = vmatpush1.msra.mxu0 %v72
    %247 = vmatprep.subr.mxu0 %v75
    %248 = vmatpush1.msra.mxu0 %v74
    %249 = vmatprep.subr.mxu0 %v77
    %250 = vmatpush1.msra.mxu0 %v76
    %251 = vmatprep.subr.mxu0 %v79
    %252 = vmatpush1.msra.mxu0 %v78
    %253 = vmatprep.subr.mxu0 %v81
    %254 = vmatpush1.msra.mxu0 %v80
    %255 = vmatprep.subr.mxu0 %v83
    %256 = vmatpush1.msra.mxu0 %v82
    %257 = vmatprep.subr.mxu0 0.0
    %258 = vmatpush1.msra.mxu0 0.0
    %259 = vmatprep.subr.mxu0 0.0
    %260 = vmatpush1.msra.mxu0 0.0
    %261 = vmatprep.subr.mxu0 0.0
    %262 = vmatpush1.msra.mxu0 0.0
    %263 = vmatprep.subr.mxu0 0.0
    %264 = vmatpush1.msra.mxu0 0.0
    %265 = vmatprep.subr.mxu0 0.0
    %266 = vmatpush1.msra.mxu0 0.0
    %267 = vmatprep.subr.mxu0 0.0
    %268 = vmatpush1.msra.mxu0 0.0
    %269 = vmatprep.subr.mxu0 0.0
    %270 = vmatpush1.msra.mxu0 0.0
    %271 = vmatprep.subr.mxu0 0.0
    %272 = vmatpush1.msra.mxu0 0.0
    %273 = vmatprep.mubr.f32.mxu0 %v207
    %274 = vmatmul.mubr.f32.gmra.mrb[0].mxu0 %v194
    %v275 = vpop.f32.mrb[0].mxu0
    %v276 = vadd.f32 0.0, %v275
    %v277 = vpop.f32.mrb[0].mxu0
    %v278 = vadd.f32 0.0, %v277
    %279 = vdwg.mxu0
    %v280 = vmul.f32 %v276, 2.0
    %v281 = vmul.f32 %v278, 2.0
    %v282 = vsub.f32 %v280, %v117
    %v283 = vsub.f32 %v281, %v119
    %284 = vst [vmem:[#allocation2 + $0x10] sm:$0xf] %v282
    %285 = vst.msk [vmem:[#allocation2 + $0x18] sm:$0xf] %vm122, %v283
    %v286 = vld [vmem:[#allocation2] sm:$0xff]
    %v287 = vld [vmem:[#allocation2 + $0x8] sm:$0xff]
    %v288 = vld [vmem:[#allocation2 + $0x10] sm:$0xf]
    %v289 = vld [vmem:[#allocation2 + $0x18] sm:$0xf]
    %vm290 = vcmask 97280
    %v292 = vsel %vm290, %v114, 0
    %vm294 = vcmask 1043456
    %v296 = vsel %vm294, %v288, 0
    %v299 = vsel %vm294, %v289, 0
    %301 = vmatprep.subr.mxu0 %v287
    %302 = vmatpush1.msra.mxu0 %v286
    %303 = vmatprep.subr.mxu0 %v299
    %304 = vmatpush1.msra.mxu0 %v296
    %305 = vmatprep.subr.mxu0 0.0
    %306 = vmatpush1.msra.mxu0 0.0
    %307 = vmatprep.subr.mxu0 0.0
    %308 = vmatpush1.msra.mxu0 0.0
    %309 = vmatprep.subr.mxu0 0.0
    %310 = vmatpush1.msra.mxu0 0.0
    %311 = vmatprep.subr.mxu0 0.0
    %312 = vmatpush1.msra.mxu0 0.0
    %313 = vmatprep.subr.mxu0 0.0
    %314 = vmatpush1.msra.mxu0 0.0
    %315 = vmatprep.subr.mxu0 0.0
    %316 = vmatpush1.msra.mxu0 0.0
    %317 = vmatprep.subr.mxu0 0.0
    %318 = vmatpush1.msra.mxu0 0.0
    %319 = vmatprep.subr.mxu0 0.0
    %320 = vmatpush1.msra.mxu0 0.0
    %321 = vmatprep.subr.mxu0 0.0
    %322 = vmatpush1.msra.mxu0 0.0
    %323 = vmatprep.subr.mxu0 0.0
    %324 = vmatpush1.msra.mxu0 0.0
    %325 = vmatprep.subr.mxu0 0.0
    %326 = vmatpush1.msra.mxu0 0.0
    %327 = vmatprep.subr.mxu0 0.0
    %328 = vmatpush1.msra.mxu0 0.0
    %329 = vmatprep.subr.mxu0 0.0
    %330 = vmatpush1.msra.mxu0 0.0
    %331 = vmatprep.subr.mxu0 0.0
    %332 = vmatpush1.msra.mxu0 0.0
    %333 = vmatprep.subr.mxu0 0.0
    %334 = vmatpush1.msra.mxu0 0.0
    %335 = vmatprep.subr.mxu0 0.0
    %336 = vmatpush1.msra.mxu0 0.0
    %337 = vmatprep.subr.mxu0 0.0
    %338 = vmatpush1.msra.mxu0 0.0
    %339 = vmatprep.subr.mxu0 0.0
    %340 = vmatpush1.msra.mxu0 0.0
    %341 = vmatprep.subr.mxu0 0.0
    %342 = vmatpush1.msra.mxu0 0.0
    %343 = vmatprep.subr.mxu0 0.0
    %344 = vmatpush1.msra.mxu0 0.0
    %345 = vmatprep.subr.mxu0 0.0
    %346 = vmatpush1.msra.mxu0 0.0
    %347 = vmatprep.subr.mxu0 0.0
    %348 = vmatpush1.msra.mxu0 0.0
    %349 = vmatprep.subr.mxu0 0.0
    %350 = vmatpush1.msra.mxu0 0.0
    %351 = vmatprep.subr.mxu0 0.0
    %352 = vmatpush1.msra.mxu0 0.0
    %353 = vmatprep.subr.mxu0 0.0
    %354 = vmatpush1.msra.mxu0 0.0
    %355 = vmatprep.subr.mxu0 0.0
    %356 = vmatpush1.msra.mxu0 0.0
    %357 = vmatprep.subr.mxu0 0.0
    %358 = vmatpush1.msra.mxu0 0.0
    %359 = vmatprep.subr.mxu0 0.0
    %360 = vmatpush1.msra.mxu0 0.0
    %361 = vmatprep.subr.mxu0 0.0
    %362 = vmatpush1.msra.mxu0 0.0
    %363 = vmatprep.subr.mxu0 0.0
    %364 = vmatpush1.msra.mxu0 0.0
    %365 = vmatprep.mubr.f32.mxu0 0.0
    %366 = vmatmul.mubr.f32.gmra.mrb[0].mxu0 %v292
    %v367 = vpop.f32.mrb[0].mxu0
    %v368 = vadd.f32 0.0, %v367
    %v369 = vpop.f32.mrb[0].mxu0
    %v370 = vadd.f32 0.0, %v369
    %371 = vdwg.mxu0
    %372 = vst [vmem:[#allocation3] sm:$0xff] %v368
    %373 = vst.msk [vmem:[#allocation3 + $0x8] sm:$0xff] %vm124, %v370
    %s374 = scalar_lea.vmem %s0, 8
    %v375 = vld [vmem:[%s374] sm:$0xff]
    %v377 = vcombine.high %v375, %v375
    %379 = vst [vmem:[#allocation2] sm:$0xf] %v375
    %380 = vst.msk [vmem:[#allocation2 + $0x8] sm:$0xf] %vm122, %v377
    %v381 = vsel %vm124, %v377, 0
    %383 = vmatprep.subr.mxu0 %v37
    %384 = vmatpush1.msra.mxu0 %v36
    %385 = vmatprep.subr.mxu0 %v39
    %386 = vmatpush1.msra.mxu0 %v38
    %387 = vmatprep.subr.mxu0 %v41
    %388 = vmatpush1.msra.mxu0 %v40
    %389 = vmatprep.subr.mxu0 %v43
    %390 = vmatpush1.msra.mxu0 %v42
    %391 = vmatprep.subr.mxu0 %v45
    %392 = vmatpush1.msra.mxu0 %v44
    %393 = vmatprep.subr.mxu0 %v47
    %394 = vmatpush1.msra.mxu0 %v46
    %395 = vmatprep.subr.mxu0 %v49
    %396 = vmatpush1.msra.mxu0 %v48
    %397 = vmatprep.subr.mxu0 %v51
    %398 = vmatpush1.msra.mxu0 %v50
    %399 = vmatprep.subr.mxu0 %v53
    %400 = vmatpush1.msra.mxu0 %v52
    %401 = vmatprep.subr.mxu0 %v55
    %402 = vmatpush1.msra.mxu0 %v54
    %403 = vmatprep.subr.mxu0 %v57
    %404 = vmatpush1.msra.mxu0 %v56
    %405 = vmatprep.subr.mxu0 %v59
    %406 = vmatpush1.msra.mxu0 %v58
    %407 = vmatprep.subr.mxu0 %v61
    %408 = vmatpush1.msra.mxu0 %v60
    %409 = vmatprep.subr.mxu0 %v63
    %410 = vmatpush1.msra.mxu0 %v62
    %411 = vmatprep.subr.mxu0 %v65
    %412 = vmatpush1.msra.mxu0 %v64
    %413 = vmatprep.subr.mxu0 %v67
    %414 = vmatpush1.msra.mxu0 %v66
    %415 = vmatprep.subr.mxu0 %v69
    %416 = vmatpush1.msra.mxu0 %v68
    %417 = vmatprep.subr.mxu0 %v71
    %418 = vmatpush1.msra.mxu0 %v70
    %419 = vmatprep.subr.mxu0 %v73
    %420 = vmatpush1.msra.mxu0 %v72
    %421 = vmatprep.subr.mxu0 %v75
    %422 = vmatpush1.msra.mxu0 %v74
    %423 = vmatprep.subr.mxu0 %v77
    %424 = vmatpush1.msra.mxu0 %v76
    %425 = vmatprep.subr.mxu0 %v79
    %426 = vmatpush1.msra.mxu0 %v78
    %427 = vmatprep.subr.mxu0 %v81
    %428 = vmatpush1.msra.mxu0 %v80
    %429 = vmatprep.subr.mxu0 %v83
    %430 = vmatpush1.msra.mxu0 %v82
    %431 = vmatprep.subr.mxu0 0.0
    %432 = vmatpush1.msra.mxu0 0.0
    %433 = vmatprep.subr.mxu0 0.0
    %434 = vmatpush1.msra.mxu0 0.0
    %435 = vmatprep.subr.mxu0 0.0
    %436 = vmatpush1.msra.mxu0 0.0
    %437 = vmatprep.subr.mxu0 0.0
    %438 = vmatpush1.msra.mxu0 0.0
    %439 = vmatprep.subr.mxu0 0.0
    %440 = vmatpush1.msra.mxu0 0.0
    %441 = vmatprep.subr.mxu0 0.0
    %442 = vmatpush1.msra.mxu0 0.0
    %443 = vmatprep.subr.mxu0 0.0
    %444 = vmatpush1.msra.mxu0 0.0
    %445 = vmatprep.subr.mxu0 0.0
    %446 = vmatpush1.msra.mxu0 0.0
    %447 = vmatprep.mubr.f32.mxu0 %v381
    %448 = vmatmul.mubr.f32.gmra.mrb[0].mxu0 %v375
    %v449 = vpop.f32.mrb[0].mxu0
    %v450 = vadd.f32 0.0, %v449
    %v451 = vpop.f32.mrb[0].mxu0
    %v452 = vadd.f32 0.0, %v451
    %453 = vdwg.mxu0
    %v456 = vrot.slane %v450, 4
    %v457 = vrot.slane %v452, 4
    %460 = vst [vmem:[#allocation2] sm:$0xf0] %v456
    %461 = vst.msk [vmem:[#allocation2 + $0x8] sm:$0xf0] %vm205, %v457
    %v462 = vsel %vm124, %v452, 0
    %464 = vmatprep.subr.mxu0 %v37
    %465 = vmatpush1.msra.mxu0 %v36
    %466 = vmatprep.subr.mxu0 %v39
    %467 = vmatpush1.msra.mxu0 %v38
    %468 = vmatprep.subr.mxu0 %v41
    %469 = vmatpush1.msra.mxu0 %v40
    %470 = vmatprep.subr.mxu0 %v43
    %471 = vmatpush1.msra.mxu0 %v42
    %472 = vmatprep.subr.mxu0 %v45
    %473 = vmatpush1.msra.mxu0 %v44
    %474 = vmatprep.subr.mxu0 %v47
    %475 = vmatpush1.msra.mxu0 %v46
    %476 = vmatprep.subr.mxu0 %v49
    %477 = vmatpush1.msra.mxu0 %v48
    %478 = vmatprep.subr.mxu0 %v51
    %479 = vmatpush1.msra.mxu0 %v50
    %480 = vmatprep.subr.mxu0 %v53
    %481 = vmatpush1.msra.mxu0 %v52
    %482 = vmatprep.subr.mxu0 %v55
    %483 = vmatpush1.msra.mxu0 %v54
    %484 = vmatprep.subr.mxu0 %v57
    %485 = vmatpush1.msra.mxu0 %v56
    %486 = vmatprep.subr.mxu0 %v59
    %487 = vmatpush1.msra.mxu0 %v58
    %488 = vmatprep.subr.mxu0 %v61
    %489 = vmatpush1.msra.mxu0 %v60
    %490 = vmatprep.subr.mxu0 %v63
    %491 = vmatpush1.msra.mxu0 %v62
    %492 = vmatprep.subr.mxu0 %v65
    %493 = vmatpush1.msra.mxu0 %v64
    %494 = vmatprep.subr.mxu0 %v67
    %495 = vmatpush1.msra.mxu0 %v66
    %496 = vmatprep.subr.mxu0 %v69
    %497 = vmatpush1.msra.mxu0 %v68
    %498 = vmatprep.subr.mxu0 %v71
    %499 = vmatpush1.msra.mxu0 %v70
    %500 = vmatprep.subr.mxu0 %v73
    %501 = vmatpush1.msra.mxu0 %v72
    %502 = vmatprep.subr.mxu0 %v75
    %503 = vmatpush1.msra.mxu0 %v74
    %504 = vmatprep.subr.mxu0 %v77
    %505 = vmatpush1.msra.mxu0 %v76
    %506 = vmatprep.subr.mxu0 %v79
    %507 = vmatpush1.msra.mxu0 %v78
    %508 = vmatprep.subr.mxu0 %v81
    %509 = vmatpush1.msra.mxu0 %v80
    %510 = vmatprep.subr.mxu0 %v83
    %511 = vmatpush1.msra.mxu0 %v82
    %512 = vmatprep.subr.mxu0 0.0
    %513 = vmatpush1.msra.mxu0 0.0
    %514 = vmatprep.subr.mxu0 0.0
    %515 = vmatpush1.msra.mxu0 0.0
    %516 = vmatprep.subr.mxu0 0.0
    %517 = vmatpush1.msra.mxu0 0.0
    %518 = vmatprep.subr.mxu0 0.0
    %519 = vmatpush1.msra.mxu0 0.0
    %520 = vmatprep.subr.mxu0 0.0
    %521 = vmatpush1.msra.mxu0 0.0
    %522 = vmatprep.subr.mxu0 0.0
    %523 = vmatpush1.msra.mxu0 0.0
    %524 = vmatprep.subr.mxu0 0.0
    %525 = vmatpush1.msra.mxu0 0.0
    %526 = vmatprep.subr.mxu0 0.0
    %527 = vmatpush1.msra.mxu0 0.0
    %528 = vmatprep.mubr.f32.mxu0 %v462
    %529 = vmatmul.mubr.f32.gmra.mrb[0].mxu0 %v450
    %v530 = vpop.f32.mrb[0].mxu0
    %v531 = vadd.f32 0.0, %v530
    %v532 = vpop.f32.mrb[0].mxu0
    %v533 = vadd.f32 0.0, %v532
    %534 = vdwg.mxu0
    %v535 = vmul.f32 %v531, 2.0
    %v536 = vmul.f32 %v533, 2.0
    %v537 = vsub.f32 %v535, %v375
    %v538 = vsub.f32 %v536, %v377
    %539 = vst [vmem:[#allocation2 + $0x10] sm:$0xf] %v537
    %540 = vst.msk [vmem:[#allocation2 + $0x18] sm:$0xf] %vm122, %v538
    %v541 = vld [vmem:[#allocation2] sm:$0xff]
    %v542 = vld [vmem:[#allocation2 + $0x8] sm:$0xff]
    %v543 = vld [vmem:[#allocation2 + $0x10] sm:$0xf]
    %v544 = vld [vmem:[#allocation2 + $0x18] sm:$0xf]
    %v546 = vsel %vm294, %v543, 0
    %v549 = vsel %vm294, %v544, 0
    %551 = vmatprep.subr.mxu0 %v542
    %552 = vmatpush1.msra.mxu0 %v541
    %553 = vmatprep.subr.mxu0 %v549
    %554 = vmatpush1.msra.mxu0 %v546
    %555 = vmatprep.subr.mxu0 0.0
    %556 = vmatpush1.msra.mxu0 0.0
    %557 = vmatprep.subr.mxu0 0.0
    %558 = vmatpush1.msra.mxu0 0.0
    %559 = vmatprep.subr.mxu0 0.0
    %560 = vmatpush1.msra.mxu0 0.0
    %561 = vmatprep.subr.mxu0 0.0
    %562 = vmatpush1.msra.mxu0 0.0
    %563 = vmatprep.subr.mxu0 0.0
    %564 = vmatpush1.msra.mxu0 0.0
    %565 = vmatprep.subr.mxu0 0.0
    %566 = vmatpush1.msra.mxu0 0.0
    %567 = vmatprep.subr.mxu0 0.0
    %568 = vmatpush1.msra.mxu0 0.0
    %569 = vmatprep.subr.mxu0 0.0
    %570 = vmatpush1.msra.mxu0 0.0
    %571 = vmatprep.subr.mxu0 0.0
    %572 = vmatpush1.msra.mxu0 0.0
    %573 = vmatprep.subr.mxu0 0.0
    %574 = vmatpush1.msra.mxu0 0.0
    %575 = vmatprep.subr.mxu0 0.0
    %576 = vmatpush1.msra.mxu0 0.0
    %577 = vmatprep.subr.mxu0 0.0
    %578 = vmatpush1.msra.mxu0 0.0
    %579 = vmatprep.subr.mxu0 0.0
    %580 = vmatpush1.msra.mxu0 0.0
    %581 = vmatprep.subr.mxu0 0.0
    %582 = vmatpush1.msra.mxu0 0.0
    %583 = vmatprep.subr.mxu0 0.0
    %584 = vmatpush1.msra.mxu0 0.0
    %585 = vmatprep.subr.mxu0 0.0
    %586 = vmatpush1.msra.mxu0 0.0
    %587 = vmatprep.subr.mxu0 0.0
    %588 = vmatpush1.msra.mxu0 0.0
    %589 = vmatprep.subr.mxu0 0.0
    %590 = vmatpush1.msra.mxu0 0.0
    %591 = vmatprep.subr.mxu0 0.0
    %592 = vmatpush1.msra.mxu0 0.0
    %593 = vmatprep.subr.mxu0 0.0
    %594 = vmatpush1.msra.mxu0 0.0
    %595 = vmatprep.subr.mxu0 0.0
    %596 = vmatpush1.msra.mxu0 0.0
    %597 = vmatprep.subr.mxu0 0.0
    %598 = vmatpush1.msra.mxu0 0.0
    %599 = vmatprep.subr.mxu0 0.0
    %600 = vmatpush1.msra.mxu0 0.0
    %601 = vmatprep.subr.mxu0 0.0
    %602 = vmatpush1.msra.mxu0 0.0
    %603 = vmatprep.subr.mxu0 0.0
    %604 = vmatpush1.msra.mxu0 0.0
    %605 = vmatprep.subr.mxu0 0.0
    %606 = vmatpush1.msra.mxu0 0.0
    %607 = vmatprep.subr.mxu0 0.0
    %608 = vmatpush1.msra.mxu0 0.0
    %609 = vmatprep.subr.mxu0 0.0
    %610 = vmatpush1.msra.mxu0 0.0
    %611 = vmatprep.subr.mxu0 0.0
    %612 = vmatpush1.msra.mxu0 0.0
    %613 = vmatprep.subr.mxu0 0.0
    %614 = vmatpush1.msra.mxu0 0.0
    %615 = vmatprep.mubr.f32.mxu0 0.0
    %616 = vmatmul.mubr.f32.gmra.mrb[0].mxu0 %v292
    %v617 = vpop.f32.mrb[0].mxu0
    %v618 = vadd.f32 0.0, %v617
    %v619 = vpop.f32.mrb[0].mxu0
    %v620 = vadd.f32 0.0, %v619
    %621 = vdwg.mxu0
    %s622 = scalar_lea.vmem [#allocation3], 16
    %623 = vst [vmem:[%s622] sm:$0xff] %v618
    %624 = vst.msk [vmem:[%s622 + $0x8] sm:$0xff] %vm124, %v620
    %v625 = vld [vmem:[#allocation3] sm:$0xff]
    %v626 = vld [vmem:[#allocation3 + $0x8] sm:$0xff]
    %v627 = vld [vmem:[#allocation3 + $0x10] sm:$0xff]
    %v628 = vld [vmem:[#allocation3 + $0x18] sm:$0xff]
    %v629 = vld [vmem:[%s6] sm:$0xff]
    %v630 = vld [vmem:[%s7] sm:$0xff]
    %v631 = vsel %vm124, %v626, 0.0
    %v632 = vadd.f32 %v625, %v631
    %633 = vadd.xlane.f32.xlu0 %v632
    %v634 = vpop.xlane.xlu0 %633
    %v635 = vsel %vm124, %v628, 0.0
    %v636 = vadd.f32 %v627, %v635
    %637 = vadd.xlane.f32.xlu0 %v636
    %v638 = vpop.xlane.xlu0 %637
    %v639 = vadd.f32 %v634, %v638
    %v640 = vrcp.pop 384.0
    %v641 = vmul.f32 %v639, %v640
    %v642 = vsub.f32 %v625, %v641
    %v643 = vsub.f32 %v626, %v641
    %v644 = vsub.f32 %v627, %v641
    %v645 = vsub.f32 %v628, %v641
    %v646 = vmul.f32 %v642, %v642
    %v647 = vmul.f32 %v643, %v643
    %v648 = vmul.f32 %v644, %v644
    %v649 = vmul.f32 %v645, %v645
    %v650 = vsel %vm124, %v647, 0.0
    %v651 = vadd.f32 %v646, %v650
    %652 = vadd.xlane.f32.xlu0 %v651
    %v653 = vpop.xlane.xlu0 %652
    %v654 = vsel %vm124, %v649, 0.0
    %v655 = vadd.f32 %v648, %v654
    %656 = vadd.xlane.f32.xlu0 %v655
    %v657 = vpop.xlane.xlu0 %656
    %v658 = vadd.f32 %v653, %v657
    %v659 = vmul.f32 %v658, %v640
    %v660 = vadd.f32 %v659, 1e-05
    %v661 = vrsqrt.pop %v660
    %v662 = vmul.f32 %v642, %v661
    %v663 = vmul.f32 %v643, %v661
    %v664 = vmul.f32 %v644, %v661
    %v665 = vmul.f32 %v645, %v661
    %667 = vset.pattern.permute.xlu0 0
    %668 = vperm.xlu0 %667, %v629
    %v669 = vpop.permute.xlu0 %668
    %v671 = vmul.f32 %v662, %v669
    %v672 = vmul.f32 %v663, %v669
    %v673 = vmul.f32 %v664, %v669
    %v674 = vmul.f32 %v665, %v669
    %676 = vset.pattern.permute.xlu0 0
    %677 = vperm.xlu0 %676, %v630
    %v678 = vpop.permute.xlu0 %677
    %v680 = vadd.f32 %v671, %v678
    %v681 = vadd.f32 %v672, %v678
    %v682 = vadd.f32 %v673, %v678
    %v683 = vadd.f32 %v674, %v678
    %v684 = vmax.f32 %v680, 0.0
    %v685 = vmax.f32 %v681, 0.0
    %v686 = vmax.f32 %v682, 0.0
    %v687 = vmax.f32 %v683, 0.0
    %v689 = vsel %vm124, %v685, 0
    %691 = vmatprep.subr.mxu0 0.0
    %692 = vmatpush1.msra.mxu0 %v90
    %693 = vmatprep.subr.mxu0 0.0
    %694 = vmatpush1.msra.mxu0 %v91
    %695 = vmatprep.subr.mxu0 0.0
    %696 = vmatpush1.msra.mxu0 %v92
    %697 = vmatprep.subr.mxu0 0.0
    %698 = vmatpush1.msra.mxu0 %v93
    %699 = vmatprep.subr.mxu0 0.0
    %700 = vmatpush1.msra.mxu0 %v94
    %701 = vmatprep.subr.mxu0 0.0
    %702 = vmatpush1.msra.mxu0 %v95
    %703 = vmatprep.subr.mxu0 0.0
    %704 = vmatpush1.msra.mxu0 %v96
    %705 = vmatprep.subr.mxu0 0.0
    %706 = vmatpush1.msra.mxu0 %v97
    %707 = vmatprep.subr.mxu0 0.0
    %708 = vmatpush1.msra.mxu0 %v98
    %709 = vmatprep.subr.mxu0 0.0
    %710 = vmatpush1.msra.mxu0 %v99
    %711 = vmatprep.subr.mxu0 0.0
    %712 = vmatpush1.msra.mxu0 %v100
    %713 = vmatprep.subr.mxu0 0.0
    %714 = vmatpush1.msra.mxu0 %v101
    %715 = vmatprep.subr.mxu0 0.0
    %716 = vmatpush1.msra.mxu0 %v102
    %717 = vmatprep.subr.mxu0 0.0
    %718 = vmatpush1.msra.mxu0 %v103
    %719 = vmatprep.subr.mxu0 0.0
    %720 = vmatpush1.msra.mxu0 %v104
    %721 = vmatprep.subr.mxu0 0.0
    %722 = vmatpush1.msra.mxu0 %v105
    %723 = vmatprep.subr.mxu0 0.0
    %724 = vmatpush1.msra.mxu0 %v106
    %725 = vmatprep.subr.mxu0 0.0
    %726 = vmatpush1.msra.mxu0 %v107
    %727 = vmatprep.subr.mxu0 0.0
    %728 = vmatpush1.msra.mxu0 %v108
    %729 = vmatprep.subr.mxu0 0.0
    %730 = vmatpush1.msra.mxu0 %v109
    %731 = vmatprep.subr.mxu0 0.0
    %732 = vmatpush1.msra.mxu0 %v110
    %733 = vmatprep.subr.mxu0 0.0
    %734 = vmatpush1.msra.mxu0 %v111
    %735 = vmatprep.subr.mxu0 0.0
    %736 = vmatpush1.msra.mxu0 %v112
    %737 = vmatprep.subr.mxu0 0.0
    %738 = vmatpush1.msra.mxu0 %v113
    %739 = vmatprep.subr.mxu0 0.0
    %740 = vmatpush1.msra.mxu0 0.0
    %741 = vmatprep.subr.mxu0 0.0
    %742 = vmatpush1.msra.mxu0 0.0
    %743 = vmatprep.subr.mxu0 0.0
    %744 = vmatpush1.msra.mxu0 0.0
    %745 = vmatprep.subr.mxu0 0.0
    %746 = vmatpush1.msra.mxu0 0.0
    %747 = vmatprep.subr.mxu0 0.0
    %748 = vmatpush1.msra.mxu0 0.0
    %749 = vmatprep.subr.mxu0 0.0
    %750 = vmatpush1.msra.mxu0 0.0
    %751 = vmatprep.subr.mxu0 0.0
    %752 = vmatpush1.msra.mxu0 0.0
    %753 = vmatprep.subr.mxu0 0.0
    %754 = vmatpush1.msra.mxu0 0.0
    %755 = vmatprep.mubr.f32.mxu0 %v689
    %756 = vmatmul.mubr.f32.gmra.mrb[0].mxu0 %v684
    %v757 = vpop.f32.mrb[0].mxu0
    %v758 = vadd.f32 0.0, %v757
    %v759 = vpop.f32.mrb[0].mxu0
    %760 = vdwg.mxu0
    %vm761 = vcmask 392192
    %762 = vst.msk [vmem:[#allocation4] sm:$0xff] %vm761, %v758
    %v764 = vsel %vm761, %v758, 0
    %766 = vmatprep.subr.mxu0 0.0
    %767 = vmatpush1.msra.mxu0 %v84
    %768 = vmatprep.subr.mxu0 0.0
    %769 = vmatpush1.msra.mxu0 %v85
    %770 = vmatprep.subr.mxu0 0.0
    %771 = vmatpush1.msra.mxu0 %v86
    %772 = vmatprep.subr.mxu0 0.0
    %773 = vmatpush1.msra.mxu0 %v87
    %774 = vmatprep.subr.mxu0 0.0
    %775 = vmatpush1.msra.mxu0 %v88
    %776 = vmatprep.subr.mxu0 0.0
    %777 = vmatpush1.msra.mxu0 %v89
    %778 = vmatprep.subr.mxu0 0.0
    %779 = vmatpush1.msra.mxu0 0.0
    %780 = vmatprep.subr.mxu0 0.0
    %781 = vmatpush1.msra.mxu0 0.0
    %782 = vmatprep.subr.mxu0 0.0
    %783 = vmatpush1.msra.mxu0 0.0
    %784 = vmatprep.subr.mxu0 0.0
    %785 = vmatpush1.msra.mxu0 0.0
    %786 = vmatprep.subr.mxu0 0.0
    %787 = vmatpush1.msra.mxu0 0.0
    %788 = vmatprep.subr.mxu0 0.0
    %789 = vmatpush1.msra.mxu0 0.0
    %790 = vmatprep.subr.mxu0 0.0
    %791 = vmatpush1.msra.mxu0 0.0
    %792 = vmatprep.subr.mxu0 0.0
    %793 = vmatpush1.msra.mxu0 0.0
    %794 = vmatprep.subr.mxu0 0.0
    %795 = vmatpush1.msra.mxu0 0.0
    %796 = vmatprep.subr.mxu0 0.0
    %797 = vmatpush1.msra.mxu0 0.0
    %798 = vmatprep.subr.mxu0 0.0
    %799 = vmatpush1.msra.mxu0 0.0
    %800 = vmatprep.subr.mxu0 0.0
    %801 = vmatpush1.msra.mxu0 0.0
    %802 = vmatprep.subr.mxu0 0.0
    %803 = vmatpush1.msra.mxu0 0.0
    %804 = vmatprep.subr.mxu0 0.0
    %805 = vmatpush1.msra.mxu0 0.0
    %806 = vmatprep.subr.mxu0 0.0
    %807 = vmatpush1.msra.mxu0 0.0
    %808 = vmatprep.subr.mxu0 0.0
    %809 = vmatpush1.msra.mxu0 0.0
    %810 = vmatprep.subr.mxu0 0.0
    %811 = vmatpush1.msra.mxu0 0.0
    %812 = vmatprep.subr.mxu0 0.0
    %813 = vmatpush1.msra.mxu0 0.0
    %814 = vmatprep.subr.mxu0 0.0
    %815 = vmatpush1.msra.mxu0 0.0
    %816 = vmatprep.subr.mxu0 0.0
    %817 = vmatpush1.msra.mxu0 0.0
    %818 = vmatprep.subr.mxu0 0.0
    %819 = vmatpush1.msra.mxu0 0.0
    %820 = vmatprep.subr.mxu0 0.0
    %821 = vmatpush1.msra.mxu0 0.0
    %822 = vmatprep.subr.mxu0 0.0
    %823 = vmatpush1.msra.mxu0 0.0
    %824 = vmatprep.subr.mxu0 0.0
    %825 = vmatpush1.msra.mxu0 0.0
    %826 = vmatprep.subr.mxu0 0.0
    %827 = vmatpush1.msra.mxu0 0.0
    %828 = vmatprep.subr.mxu0 0.0
    %829 = vmatpush1.msra.mxu0 0.0
    %830 = vmatprep.mubr.f32.mxu0 0.0
    %831 = vmatmul.mubr.f32.gmra.mrb[0].mxu0 %v764
    %v832 = vpop.f32.mrb[0].mxu0
    %v833 = vadd.f32 0.0, %v832
    %v834 = vpop.f32.mrb[0].mxu0
    %835 = vdwg.mxu0
    %836 = vst.msk [vmem:[#allocation4 + $0x8] sm:$0xff] %vm761, %v833
    %v838 = vsel %vm761, %v833, 0
    %840 = vmatprep.subr.mxu0 0.0
    %841 = vmatpush1.msra.mxu0 %v84
    %842 = vmatprep.subr.mxu0 0.0
    %843 = vmatpush1.msra.mxu0 %v85
    %844 = vmatprep.subr.mxu0 0.0
    %845 = vmatpush1.msra.mxu0 %v86
    %846 = vmatprep.subr.mxu0 0.0
    %847 = vmatpush1.msra.mxu0 %v87
    %848 = vmatprep.subr.mxu0 0.0
    %849 = vmatpush1.msra.mxu0 %v88
    %850 = vmatprep.subr.mxu0 0.0
    %851 = vmatpush1.msra.mxu0 %v89
    %852 = vmatprep.subr.mxu0 0.0
    %853 = vmatpush1.msra.mxu0 0.0
    %854 = vmatprep.subr.mxu0 0.0
    %855 = vmatpush1.msra.mxu0 0.0
    %856 = vmatprep.subr.mxu0 0.0
    %857 = vmatpush1.msra.mxu0 0.0
    %858 = vmatprep.subr.mxu0 0.0
    %859 = vmatpush1.msra.mxu0 0.0
    %860 = vmatprep.subr.mxu0 0.0
    %861 = vmatpush1.msra.mxu0 0.0
    %862 = vmatprep.subr.mxu0 0.0
    %863 = vmatpush1.msra.mxu0 0.0
    %864 = vmatprep.subr.mxu0 0.0
    %865 = vmatpush1.msra.mxu0 0.0
    %866 = vmatprep.subr.mxu0 0.0
    %867 = vmatpush1.msra.mxu0 0.0
    %868 = vmatprep.subr.mxu0 0.0
    %869 = vmatpush1.msra.mxu0 0.0
    %870 = vmatprep.subr.mxu0 0.0
    %871 = vmatpush1.msra.mxu0 0.0
    %872 = vmatprep.subr.mxu0 0.0
    %873 = vmatpush1.msra.mxu0 0.0
    %874 = vmatprep.subr.mxu0 0.0
    %875 = vmatpush1.msra.mxu0 0.0
    %876 = vmatprep.subr.mxu0 0.0
    %877 = vmatpush1.msra.mxu0 0.0
    %878 = vmatprep.subr.mxu0 0.0
    %879 = vmatpush1.msra.mxu0 0.0
    %880 = vmatprep.subr.mxu0 0.0
    %881 = vmatpush1.msra.mxu0 0.0
    %882 = vmatprep.subr.mxu0 0.0
    %883 = vmatpush1.msra.mxu0 0.0
    %884 = vmatprep.subr.mxu0 0.0
    %885 = vmatpush1.msra.mxu0 0.0
    %886 = vmatprep.subr.mxu0 0.0
    %887 = vmatpush1.msra.mxu0 0.0
    %888 = vmatprep.subr.mxu0 0.0
    %889 = vmatpush1.msra.mxu0 0.0
    %890 = vmatprep.subr.mxu0 0.0
    %891 = vmatpush1.msra.mxu0 0.0
    %892 = vmatprep.subr.mxu0 0.0
    %893 = vmatpush1.msra.mxu0 0.0
    %894 = vmatprep.subr.mxu0 0.0
    %895 = vmatpush1.msra.mxu0 0.0
    %896 = vmatprep.subr.mxu0 0.0
    %897 = vmatpush1.msra.mxu0 0.0
    %898 = vmatprep.subr.mxu0 0.0
    %899 = vmatpush1.msra.mxu0 0.0
    %900 = vmatprep.subr.mxu0 0.0
    %901 = vmatpush1.msra.mxu0 0.0
    %902 = vmatprep.subr.mxu0 0.0
    %903 = vmatpush1.msra.mxu0 0.0
    %904 = vmatprep.mubr.f32.mxu0 0.0
    %905 = vmatmul.mubr.f32.gmra.mrb[0].mxu0 %v838
    %v906 = vpop.f32.mrb[0].mxu0
    %v907 = vadd.f32 0.0, %v906
    %v908 = vpop.f32.mrb[0].mxu0
    %909 = vdwg.mxu0
    %v910 = vmul.f32 %v907, 2.0
    %v911 = vsub.f32 %v910, %v758
    %912 = vst.msk [vmem:[#allocation4 + $0x10] sm:$0xff] %vm761, %v911
    %v913 = vld [vmem:[#allocation4] sm:$0xff]
    %v914 = vld [vmem:[#allocation4 + $0x8] sm:$0xff]
    %v915 = vld [vmem:[#allocation4 + $0x10] sm:$0xff]
    %vm916 = vcmask 195584
    %v918 = vsel %vm916, %v115, 0
    %v921 = vsel %vm916, %v116, 0
    %923 = vmatprep.subr.mxu0 0.0
    %924 = vmatpush1.msra.mxu0 %v913
    %925 = vmatprep.subr.mxu0 0.0
    %926 = vmatpush1.msra.mxu0 %v914
    %927 = vmatprep.subr.mxu0 0.0
    %928 = vmatpush1.msra.mxu0 %v915
    %929 = vmatprep.subr.mxu0 0.0
    %930 = vmatpush1.msra.mxu0 0.0
    %931 = vmatprep.subr.mxu0 0.0
    %932 = vmatpush1.msra.mxu0 0.0
    %933 = vmatprep.subr.mxu0 0.0
    %934 = vmatpush1.msra.mxu0 0.0
    %935 = vmatprep.subr.mxu0 0.0
    %936 = vmatpush1.msra.mxu0 0.0
    %937 = vmatprep.subr.mxu0 0.0
    %938 = vmatpush1.msra.mxu0 0.0
    %939 = vmatprep.subr.mxu0 0.0
    %940 = vmatpush1.msra.mxu0 0.0
    %941 = vmatprep.subr.mxu0 0.0
    %942 = vmatpush1.msra.mxu0 0.0
    %943 = vmatprep.subr.mxu0 0.0
    %944 = vmatpush1.msra.mxu0 0.0
    %945 = vmatprep.subr.mxu0 0.0
    %946 = vmatpush1.msra.mxu0 0.0
    %947 = vmatprep.subr.mxu0 0.0
    %948 = vmatpush1.msra.mxu0 0.0
    %949 = vmatprep.subr.mxu0 0.0
    %950 = vmatpush1.msra.mxu0 0.0
    %951 = vmatprep.subr.mxu0 0.0
    %952 = vmatpush1.msra.mxu0 0.0
    %953 = vmatprep.subr.mxu0 0.0
    %954 = vmatpush1.msra.mxu0 0.0
    %955 = vmatprep.subr.mxu0 0.0
    %956 = vmatpush1.msra.mxu0 0.0
    %957 = vmatprep.subr.mxu0 0.0
    %958 = vmatpush1.msra.mxu0 0.0
    %959 = vmatprep.subr.mxu0 0.0
    %960 = vmatpush1.msra.mxu0 0.0
    %961 = vmatprep.subr.mxu0 0.0
    %962 = vmatpush1.msra.mxu0 0.0
    %963 = vmatprep.subr.mxu0 0.0
    %964 = vmatpush1.msra.mxu0 0.0
    %965 = vmatprep.subr.mxu0 0.0
    %966 = vmatpush1.msra.mxu0 0.0
    %967 = vmatprep.subr.mxu0 0.0
    %968 = vmatpush1.msra.mxu0 0.0
    %969 = vmatprep.subr.mxu0 0.0
    %970 = vmatpush1.msra.mxu0 0.0
    %971 = vmatprep.subr.mxu0 0.0
    %972 = vmatpush1.msra.mxu0 0.0
    %973 = vmatprep.subr.mxu0 0.0
    %974 = vmatpush1.msra.mxu0 0.0
    %975 = vmatprep.subr.mxu0 0.0
    %976 = vmatpush1.msra.mxu0 0.0
    %977 = vmatprep.subr.mxu0 0.0
    %978 = vmatpush1.msra.mxu0 0.0
    %979 = vmatprep.subr.mxu0 0.0
    %980 = vmatpush1.msra.mxu0 0.0
    %981 = vmatprep.subr.mxu0 0.0
    %982 = vmatpush1.msra.mxu0 0.0
    %983 = vmatprep.subr.mxu0 0.0
    %984 = vmatpush1.msra.mxu0 0.0
    %985 = vmatprep.subr.mxu0 0.0
    %986 = vmatpush1.msra.mxu0 0.0
    %987 = vmatprep.mubr.f32.mxu0 0.0
    %988 = vmatmul.mubr.f32.gmra.mrb[0].mxu0 %v918
    %v989 = vpop.f32.mrb[0].mxu0
    %v990 = vadd.f32 0.0, %v989
    %v991 = vpop.f32.mrb[0].mxu0
    %992 = vmatprep.mubr.f32.mxu0 0.0
    %993 = vmatmul.mubr.f32.gmra.mrb[0].mxu0 %v921
    %v994 = vpop.f32.mrb[0].mxu0
    %v995 = vadd.f32 0.0, %v994
    %v996 = vpop.f32.mrb[0].mxu0
    %997 = vdwg.mxu0
    %998 = vst.msk [vmem:[#allocation5] sm:$0xff] %vm761, %v990
    %999 = vst.msk [vmem:[#allocation5 + $0x8] sm:$0xff] %vm761, %v995
    %v1001 = vsel %vm124, %v687, 0
    %1003 = vmatprep.subr.mxu0 0.0
    %1004 = vmatpush1.msra.mxu0 %v90
    %1005 = vmatprep.subr.mxu0 0.0
    %1006 = vmatpush1.msra.mxu0 %v91
    %1007 = vmatprep.subr.mxu0 0.0
    %1008 = vmatpush1.msra.mxu0 %v92
    %1009 = vmatprep.subr.mxu0 0.0
    %1010 = vmatpush1.msra.mxu0 %v93
    %1011 = vmatprep.subr.mxu0 0.0
    %1012 = vmatpush1.msra.mxu0 %v94
    %1013 = vmatprep.subr.mxu0 0.0
    %1014 = vmatpush1.msra.mxu0 %v95
    %1015 = vmatprep.subr.mxu0 0.0
    %1016 = vmatpush1.msra.mxu0 %v96
    %1017 = vmatprep.subr.mxu0 0.0
    %1018 = vmatpush1.msra.mxu0 %v97
    %1019 = vmatprep.subr.mxu0 0.0
    %1020 = vmatpush1.msra.mxu0 %v98
    %1021 = vmatprep.subr.mxu0 0.0
    %1022 = vmatpush1.msra.mxu0 %v99
    %1023 = vmatprep.subr.mxu0 0.0
    %1024 = vmatpush1.msra.mxu0 %v100
    %1025 = vmatprep.subr.mxu0 0.0
    %1026 = vmatpush1.msra.mxu0 %v101
    %1027 = vmatprep.subr.mxu0 0.0
    %1028 = vmatpush1.msra.mxu0 %v102
    %1029 = vmatprep.subr.mxu0 0.0
    %1030 = vmatpush1.msra.mxu0 %v103
    %1031 = vmatprep.subr.mxu0 0.0
    %1032 = vmatpush1.msra.mxu0 %v104
    %1033 = vmatprep.subr.mxu0 0.0
    %1034 = vmatpush1.msra.mxu0 %v105
    %1035 = vmatprep.subr.mxu0 0.0
    %1036 = vmatpush1.msra.mxu0 %v106
    %1037 = vmatprep.subr.mxu0 0.0
    %1038 = vmatpush1.msra.mxu0 %v107
    %1039 = vmatprep.subr.mxu0 0.0
    %1040 = vmatpush1.msra.mxu0 %v108
    %1041 = vmatprep.subr.mxu0 0.0
    %1042 = vmatpush1.msra.mxu0 %v109
    %1043 = vmatprep.subr.mxu0 0.0
    %1044 = vmatpush1.msra.mxu0 %v110
    %1045 = vmatprep.subr.mxu0 0.0
    %1046 = vmatpush1.msra.mxu0 %v111
    %1047 = vmatprep.subr.mxu0 0.0
    %1048 = vmatpush1.msra.mxu0 %v112
    %1049 = vmatprep.subr.mxu0 0.0
    %1050 = vmatpush1.msra.mxu0 %v113
    %1051 = vmatprep.subr.mxu0 0.0
    %1052 = vmatpush1.msra.mxu0 0.0
    %1053 = vmatprep.subr.mxu0 0.0
    %1054 = vmatpush1.msra.mxu0 0.0
    %1055 = vmatprep.subr.mxu0 0.0
    %1056 = vmatpush1.msra.mxu0 0.0
    %1057 = vmatprep.subr.mxu0 0.0
    %1058 = vmatpush1.msra.mxu0 0.0
    %1059 = vmatprep.subr.mxu0 0.0
    %1060 = vmatpush1.msra.mxu0 0.0
    %1061 = vmatprep.subr.mxu0 0.0
    %1062 = vmatpush1.msra.mxu0 0.0
    %1063 = vmatprep.subr.mxu0 0.0
    %1064 = vmatpush1.msra.mxu0 0.0
    %1065 = vmatprep.subr.mxu0 0.0
    %1066 = vmatpush1.msra.mxu0 0.0
    %1067 = vmatprep.mubr.f32.mxu0 %v1001
    %1068 = vmatmul.mubr.f32.gmra.mrb[0].mxu0 %v686
    %v1069 = vpop.f32.mrb[0].mxu0
    %v1070 = vadd.f32 0.0, %v1069
    %v1071 = vpop.f32.mrb[0].mxu0
    %1072 = vdwg.mxu0
    %1073 = vst.msk [vmem:[#allocation4] sm:$0xff] %vm761, %v1070
    %v1075 = vsel %vm761, %v1070, 0
    %1077 = vmatprep.subr.mxu0 0.0
    %1078 = vmatpush1.msra.mxu0 %v84
    %1079 = vmatprep.subr.mxu0 0.0
    %1080 = vmatpush1.msra.mxu0 %v85
    %1081 = vmatprep.subr.mxu0 0.0
    %1082 = vmatpush1.msra.mxu0 %v86
    %1083 = vmatprep.subr.mxu0 0.0
    %1084 = vmatpush1.msra.mxu0 %v87
    %1085 = vmatprep.subr.mxu0 0.0
    %1086 = vmatpush1.msra.mxu0 %v88
    %1087 = vmatprep.subr.mxu0 0.0
    %1088 = vmatpush1.msra.mxu0 %v89
    %1089 = vmatprep.subr.mxu0 0.0
    %1090 = vmatpush1.msra.mxu0 0.0
    %1091 = vmatprep.subr.mxu0 0.0
    %1092 = vmatpush1.msra.mxu0 0.0
    %1093 = vmatprep.subr.mxu0 0.0
    %1094 = vmatpush1.msra.mxu0 0.0
    %1095 = vmatprep.subr.mxu0 0.0
    %1096 = vmatpush1.msra.mxu0 0.0
    %1097 = vmatprep.subr.mxu0 0.0
    %1098 = vmatpush1.msra.mxu0 0.0
    %1099 = vmatprep.subr.mxu0 0.0
    %1100 = vmatpush1.msra.mxu0 0.0
    %1101 = vmatprep.subr.mxu0 0.0
    %1102 = vmatpush1.msra.mxu0 0.0
    %1103 = vmatprep.subr.mxu0 0.0
    %1104 = vmatpush1.msra.mxu0 0.0
    %1105 = vmatprep.subr.mxu0 0.0
    %1106 = vmatpush1.msra.mxu0 0.0
    %1107 = vmatprep.subr.mxu0 0.0
    %1108 = vmatpush1.msra.mxu0 0.0
    %1109 = vmatprep.subr.mxu0 0.0
    %1110 = vmatpush1.msra.mxu0 0.0
    %1111 = vmatprep.subr.mxu0 0.0
    %1112 = vmatpush1.msra.mxu0 0.0
    %1113 = vmatprep.subr.mxu0 0.0
    %1114 = vmatpush1.msra.mxu0 0.0
    %1115 = vmatprep.subr.mxu0 0.0
    %1116 = vmatpush1.msra.mxu0 0.0
    %1117 = vmatprep.subr.mxu0 0.0
    %1118 = vmatpush1.msra.mxu0 0.0
    %1119 = vmatprep.subr.mxu0 0.0
    %1120 = vmatpush1.msra.mxu0 0.0
    %1121 = vmatprep.subr.mxu0 0.0
    %1122 = vmatpush1.msra.mxu0 0.0
    %1123 = vmatprep.subr.mxu0 0.0
    %1124 = vmatpush1.msra.mxu0 0.0
    %1125 = vmatprep.subr.mxu0 0.0
    %1126 = vmatpush1.msra.mxu0 0.0
    %1127 = vmatprep.subr.mxu0 0.0
    %1128 = vmatpush1.msra.mxu0 0.0
    %1129 = vmatprep.subr.mxu0 0.0
    %1130 = vmatpush1.msra.mxu0 0.0
    %1131 = vmatprep.subr.mxu0 0.0
    %1132 = vmatpush1.msra.mxu0 0.0
    %1133 = vmatprep.subr.mxu0 0.0
    %1134 = vmatpush1.msra.mxu0 0.0
    %1135 = vmatprep.subr.mxu0 0.0
    %1136 = vmatpush1.msra.mxu0 0.0
    %1137 = vmatprep.subr.mxu0 0.0
    %1138 = vmatpush1.msra.mxu0 0.0
    %1139 = vmatprep.subr.mxu0 0.0
    %1140 = vmatpush1.msra.mxu0 0.0
    %1141 = vmatprep.mubr.f32.mxu0 0.0
    %1142 = vmatmul.mubr.f32.gmra.mrb[0].mxu0 %v1075
    %v1143 = vpop.f32.mrb[0].mxu0
    %v1144 = vadd.f32 0.0, %v1143
    %v1145 = vpop.f32.mrb[0].mxu0
    %1146 = vdwg.mxu0
    %1147 = vst.msk [vmem:[#allocation4 + $0x8] sm:$0xff] %vm761, %v1144
    %v1149 = vsel %vm761, %v1144, 0
    %1151 = vmatprep.subr.mxu0 0.0
    %1152 = vmatpush1.msra.mxu0 %v84
    %1153 = vmatprep.subr.mxu0 0.0
    %1154 = vmatpush1.msra.mxu0 %v85
    %1155 = vmatprep.subr.mxu0 0.0
    %1156 = vmatpush1.msra.mxu0 %v86
    %1157 = vmatprep.subr.mxu0 0.0
    %1158 = vmatpush1.msra.mxu0 %v87
    %1159 = vmatprep.subr.mxu0 0.0
    %1160 = vmatpush1.msra.mxu0 %v88
    %1161 = vmatprep.subr.mxu0 0.0
    %1162 = vmatpush1.msra.mxu0 %v89
    %1163 = vmatprep.subr.mxu0 0.0
    %1164 = vmatpush1.msra.mxu0 0.0
    %1165 = vmatprep.subr.mxu0 0.0
    %1166 = vmatpush1.msra.mxu0 0.0
    %1167 = vmatprep.subr.mxu0 0.0
    %1168 = vmatpush1.msra.mxu0 0.0
    %1169 = vmatprep.subr.mxu0 0.0
    %1170 = vmatpush1.msra.mxu0 0.0
    %1171 = vmatprep.subr.mxu0 0.0
    %1172 = vmatpush1.msra.mxu0 0.0
    %1173 = vmatprep.subr.mxu0 0.0
    %1174 = vmatpush1.msra.mxu0 0.0
    %1175 = vmatprep.subr.mxu0 0.0
    %1176 = vmatpush1.msra.mxu0 0.0
    %1177 = vmatprep.subr.mxu0 0.0
    %1178 = vmatpush1.msra.mxu0 0.0
    %1179 = vmatprep.subr.mxu0 0.0
    %1180 = vmatpush1.msra.mxu0 0.0
    %1181 = vmatprep.subr.mxu0 0.0
    %1182 = vmatpush1.msra.mxu0 0.0
    %1183 = vmatprep.subr.mxu0 0.0
    %1184 = vmatpush1.msra.mxu0 0.0
    %1185 = vmatprep.subr.mxu0 0.0
    %1186 = vmatpush1.msra.mxu0 0.0
    %1187 = vmatprep.subr.mxu0 0.0
    %1188 = vmatpush1.msra.mxu0 0.0
    %1189 = vmatprep.subr.mxu0 0.0
    %1190 = vmatpush1.msra.mxu0 0.0
    %1191 = vmatprep.subr.mxu0 0.0
    %1192 = vmatpush1.msra.mxu0 0.0
    %1193 = vmatprep.subr.mxu0 0.0
    %1194 = vmatpush1.msra.mxu0 0.0
    %1195 = vmatprep.subr.mxu0 0.0
    %1196 = vmatpush1.msra.mxu0 0.0
    %1197 = vmatprep.subr.mxu0 0.0
    %1198 = vmatpush1.msra.mxu0 0.0
    %1199 = vmatprep.subr.mxu0 0.0
    %1200 = vmatpush1.msra.mxu0 0.0
    %1201 = vmatprep.subr.mxu0 0.0
    %1202 = vmatpush1.msra.mxu0 0.0
    %1203 = vmatprep.subr.mxu0 0.0
    %1204 = vmatpush1.msra.mxu0 0.0
    %1205 = vmatprep.subr.mxu0 0.0
    %1206 = vmatpush1.msra.mxu0 0.0
    %1207 = vmatprep.subr.mxu0 0.0
    %1208 = vmatpush1.msra.mxu0 0.0
    %1209 = vmatprep.subr.mxu0 0.0
    %1210 = vmatpush1.msra.mxu0 0.0
    %1211 = vmatprep.subr.mxu0 0.0
    %1212 = vmatpush1.msra.mxu0 0.0
    %1213 = vmatprep.subr.mxu0 0.0
    %1214 = vmatpush1.msra.mxu0 0.0
    %1215 = vmatprep.mubr.f32.mxu0 0.0
    %1216 = vmatmul.mubr.f32.gmra.mrb[0].mxu0 %v1149
    %v1217 = vpop.f32.mrb[0].mxu0
    %v1218 = vadd.f32 0.0, %v1217
    %v1219 = vpop.f32.mrb[0].mxu0
    %1220 = vdwg.mxu0
    %v1221 = vmul.f32 %v1218, 2.0
    %v1222 = vsub.f32 %v1221, %v1070
    %1223 = vst.msk [vmem:[#allocation4 + $0x10] sm:$0xff] %vm761, %v1222
    %v1224 = vld [vmem:[#allocation4] sm:$0xff]
    %v1225 = vld [vmem:[#allocation4 + $0x8] sm:$0xff]
    %v1226 = vld [vmem:[#allocation4 + $0x10] sm:$0xff]
    %1227 = vmatprep.subr.mxu0 0.0
    %1228 = vmatpush1.msra.mxu0 %v1224
    %1229 = vmatprep.subr.mxu0 0.0
    %1230 = vmatpush1.msra.mxu0 %v1225
    %1231 = vmatprep.subr.mxu0 0.0
    %1232 = vmatpush1.msra.mxu0 %v1226
    %1233 = vmatprep.subr.mxu0 0.0
    %1234 = vmatpush1.msra.mxu0 0.0
    %1235 = vmatprep.subr.mxu0 0.0
    %1236 = vmatpush1.msra.mxu0 0.0
    %1237 = vmatprep.subr.mxu0 0.0
    %1238 = vmatpush1.msra.mxu0 0.0
    %1239 = vmatprep.subr.mxu0 0.0
    %1240 = vmatpush1.msra.mxu0 0.0
    %1241 = vmatprep.subr.mxu0 0.0
    %1242 = vmatpush1.msra.mxu0 0.0
    %1243 = vmatprep.subr.mxu0 0.0
    %1244 = vmatpush1.msra.mxu0 0.0
    %1245 = vmatprep.subr.mxu0 0.0
    %1246 = vmatpush1.msra.mxu0 0.0
    %1247 = vmatprep.subr.mxu0 0.0
    %1248 = vmatpush1.msra.mxu0 0.0
    %1249 = vmatprep.subr.mxu0 0.0
    %1250 = vmatpush1.msra.mxu0 0.0
    %1251 = vmatprep.subr.mxu0 0.0
    %1252 = vmatpush1.msra.mxu0 0.0
    %1253 = vmatprep.subr.mxu0 0.0
    %1254 = vmatpush1.msra.mxu0 0.0
    %1255 = vmatprep.subr.mxu0 0.0
    %1256 = vmatpush1.msra.mxu0 0.0
    %1257 = vmatprep.subr.mxu0 0.0
    %1258 = vmatpush1.msra.mxu0 0.0
    %1259 = vmatprep.subr.mxu0 0.0
    %1260 = vmatpush1.msra.mxu0 0.0
    %1261 = vmatprep.subr.mxu0 0.0
    %1262 = vmatpush1.msra.mxu0 0.0
    %1263 = vmatprep.subr.mxu0 0.0
    %1264 = vmatpush1.msra.mxu0 0.0
    %1265 = vmatprep.subr.mxu0 0.0
    %1266 = vmatpush1.msra.mxu0 0.0
    %1267 = vmatprep.subr.mxu0 0.0
    %1268 = vmatpush1.msra.mxu0 0.0
    %1269 = vmatprep.subr.mxu0 0.0
    %1270 = vmatpush1.msra.mxu0 0.0
    %1271 = vmatprep.subr.mxu0 0.0
    %1272 = vmatpush1.msra.mxu0 0.0
    %1273 = vmatprep.subr.mxu0 0.0
    %1274 = vmatpush1.msra.mxu0 0.0
    %1275 = vmatprep.subr.mxu0 0.0
    %1276 = vmatpush1.msra.mxu0 0.0
    %1277 = vmatprep.subr.mxu0 0.0
    %1278 = vmatpush1.msra.mxu0 0.0
    %1279 = vmatprep.subr.mxu0 0.0
    %1280 = vmatpush1.msra.mxu0 0.0
    %1281 = vmatprep.subr.mxu0 0.0
    %1282 = vmatpush1.msra.mxu0 0.0
    %1283 = vmatprep.subr.mxu0 0.0
    %1284 = vmatpush1.msra.mxu0 0.0
    %1285 = vmatprep.subr.mxu0 0.0
    %1286 = vmatpush1.msra.mxu0 0.0
    %1287 = vmatprep.subr.mxu0 0.0
    %1288 = vmatpush1.msra.mxu0 0.0
    %1289 = vmatprep.subr.mxu0 0.0
    %1290 = vmatpush1.msra.mxu0 0.0
    %1291 = vmatprep.mubr.f32.mxu0 0.0
    %1292 = vmatmul.mubr.f32.gmra.mrb[0].mxu0 %v918
    %v1293 = vpop.f32.mrb[0].mxu0
    %v1294 = vadd.f32 0.0, %v1293
    %v1295 = vpop.f32.mrb[0].mxu0
    %1296 = vmatprep.mubr.f32.mxu0 0.0
    %1297 = vmatmul.mubr.f32.gmra.mrb[0].mxu0 %v921
    %v1298 = vpop.f32.mrb[0].mxu0
    %v1299 = vadd.f32 0.0, %v1298
    %v1300 = vpop.f32.mrb[0].mxu0
    %1301 = vdwg.mxu0
    %s1302 = scalar_lea.vmem [#allocation5], 16
    %1303 = vst.msk [vmem:[%s1302] sm:$0xff] %vm761, %v1294
    %1304 = vst.msk [vmem:[%s1302 + $0x8] sm:$0xff] %vm761, %v1299
    %v1305 = vld [vmem:[#allocation5] sm:$0xff]
    %v1306 = vld [vmem:[#allocation5 + $0x8] sm:$0xff]
    %v1307 = vld [vmem:[#allocation5 + $0x10] sm:$0xff]
    %v1308 = vld [vmem:[#allocation5 + $0x18] sm:$0xff]
    %v1309 = vld [vmem:[%s8] sm:$0xff]
    %v1310 = vld [vmem:[%s8 + $0x8] sm:$0xff]
    %v1311 = vld [vmem:[%s9] sm:$0xff]
    %v1312 = vld [vmem:[%s9 + $0x8] sm:$0xff]
    %v1313 = vsel %vm761, %v1305, 0.0
    %1314 = vadd.xlane.f32.xlu0 %v1313
    %v1315 = vpop.xlane.xlu0 %1314
    %v1316 = vsel %vm761, %v1306, 0.0
    %1317 = vadd.xlane.f32.xlu0 %v1316
    %v1318 = vpop.xlane.xlu0 %1317
    %v1319 = vsel %vm761, %v1307, 0.0
    %1320 = vadd.xlane.f32.xlu0 %v1319
    %v1321 = vpop.xlane.xlu0 %1320
    %v1322 = vsel %vm761, %v1308, 0.0
    %1323 = vadd.xlane.f32.xlu0 %v1322
    %v1324 = vpop.xlane.xlu0 %1323
    %v1325 = vadd.f32 %v1315, %v1321
    %v1326 = vadd.f32 %v1318, %v1324
    %v1327 = vrcp.pop 96.0
    %v1328 = vmul.f32 %v1325, %v1327
    %v1329 = vmul.f32 %v1326, %v1327
    %v1330 = vsub.f32 %v1305, %v1328
    %v1331 = vsub.f32 %v1306, %v1329
    %v1332 = vsub.f32 %v1307, %v1328
    %v1333 = vsub.f32 %v1308, %v1329
    %v1334 = vmul.f32 %v1330, %v1330
    %v1335 = vmul.f32 %v1331, %v1331
    %v1336 = vmul.f32 %v1332, %v1332
    %v1337 = vmul.f32 %v1333, %v1333
    %v1338 = vsel %vm761, %v1334, 0.0
    %1339 = vadd.xlane.f32.xlu0 %v1338
    %v1340 = vpop.xlane.xlu0 %1339
    %v1341 = vsel %vm761, %v1335, 0.0
    %1342 = vadd.xlane.f32.xlu0 %v1341
    %v1343 = vpop.xlane.xlu0 %1342
    %v1344 = vsel %vm761, %v1336, 0.0
    %1345 = vadd.xlane.f32.xlu0 %v1344
    %v1346 = vpop.xlane.xlu0 %1345
    %v1347 = vsel %vm761, %v1337, 0.0
    %1348 = vadd.xlane.f32.xlu0 %v1347
    %v1349 = vpop.xlane.xlu0 %1348
    %v1350 = vadd.f32 %v1340, %v1346
    %v1351 = vadd.f32 %v1343, %v1349
    %v1352 = vmul.f32 %v1350, %v1327
    %v1353 = vmul.f32 %v1351, %v1327
    %v1354 = vadd.f32 %v1352, 1e-05
    %v1355 = vadd.f32 %v1353, 1e-05
    %v1356 = vrsqrt.pop %v1354
    %v1357 = vrsqrt.pop %v1355
    %v1358 = vmul.f32 %v1330, %v1356
    %v1359 = vmul.f32 %v1331, %v1357
    %v1360 = vmul.f32 %v1332, %v1356
    %v1361 = vmul.f32 %v1333, %v1357
    %1363 = vset.pattern.permute.xlu0 0
    %1364 = vperm.xlu0 %1363, %v1309
    %v1365 = vpop.permute.xlu0 %1364
    %1368 = vset.pattern.permute.xlu0 0
    %1369 = vperm.xlu0 %1368, %v1310
    %v1370 = vpop.permute.xlu0 %1369
    %v1372 = vmul.f32 %v1358, %v1365
    %v1373 = vmul.f32 %v1359, %v1370
    %v1374 = vmul.f32 %v1360, %v1365
    %v1375 = vmul.f32 %v1361, %v1370
    %1377 = vset.pattern.permute.xlu0 0
    %1378 = vperm.xlu0 %1377, %v1311
    %v1379 = vpop.permute.xlu0 %1378
    %1382 = vset.pattern.permute.xlu0 0
    %1383 = vperm.xlu0 %1382, %v1312
    %v1384 = vpop.permute.xlu0 %1383
    %v1386 = vadd.f32 %v1372, %v1379
    %v1387 = vadd.f32 %v1373, %v1384
    %v1388 = vadd.f32 %v1374, %v1379
    %v1389 = vadd.f32 %v1375, %v1384
    %v1390 = vmax.f32 %v1386, 0.0
    %v1391 = vmax.f32 %v1387, 0.0
    %v1392 = vmax.f32 %v1388, 0.0
    %v1393 = vmax.f32 %v1389, 0.0
    %v1394 = vsel %vm761, %v1390, 0.0
    %1395 = vadd.xlane.f32.xlu0 %v1394
    %v1396 = vpop.xlane.xlu0 %1395
    %v1397 = vsel %vm761, %v1391, 0.0
    %1398 = vadd.xlane.f32.xlu0 %v1397
    %v1399 = vpop.xlane.xlu0 %1398
    %v1400 = vsel %vm761, %v1392, 0.0
    %1401 = vadd.xlane.f32.xlu0 %v1400
    %v1402 = vpop.xlane.xlu0 %1401
    %v1403 = vsel %vm761, %v1393, 0.0
    %1404 = vadd.xlane.f32.xlu0 %v1403
    %v1405 = vpop.xlane.xlu0 %1404
    %v1406 = vrcp.pop 48.0
    %v1407 = vmul.f32 %v1396, %v1406
    %v1408 = vmul.f32 %v1399, %v1406
    %v1409 = vmul.f32 %v1402, %v1406
    %v1410 = vmul.f32 %v1405, %v1406
    %v1415 = vlaneseq
    %v1416 = vand.u32 %v1415, 127
    %v1417 = vlaneseq
    %v1418 = vshrl.u32 %v1417, 7
    %v1419 = vsub.s32 %v1416, %v1418
    %v1420 = vrot.slane %v1407, %v1419
    %v1421 = vadd.s32 %v1416, 4294967288
    %v1422 = vlaneseq
    %v1423 = vshrl.u32 %v1422, 7
    %v1424 = vsub.s32 %v1421, %v1423
    %v1425 = vrot.slane %v1408, %v1424
    %vm1426 = vcmask 130112
    %v1427 = vsel %vm1426, %v1425, %v1420
    %v1428 = vlaneseq
    %v1429 = vshrl.u32 %v1428, 7
    %v1430 = vsub.s32 %v1416, %v1429
    %v1431 = vrot.slane %v1409, %v1430
    %v1432 = vlaneseq
    %v1433 = vshrl.u32 %v1432, 7
    %v1434 = vsub.s32 %v1421, %v1433
    %v1435 = vrot.slane %v1410, %v1434
    %v1436 = vsel %vm1426, %v1435, %v1431
    %vm1437 = vcmask 1041409
    %v1438 = vsel %vm1437, %v1436, %v1427
    %vm1440 = vcmask 123904
    %1441 = vst.msk [vmem:[#allocation6] sm:$0x3] %vm1440, %v1438
    // Predicated region
    $region42: #{s2_model_forward.1} parent=1 // pred_check
      _
    $region43: #{s2_model_forward.1} parent=1 // pred_check_branch
      %1443 = sbr.rel (0) target = $region45
    $region44: #{s2_model_forward.1} parent=1 // pred_region
      %s1445 = ssub.s32 32, 32
      %1446 = vsyncadd [#allocation7], %s1445
      %s1448 = sshll.u32 [#allocation6], 4
      %s1449 = int_to_ptr.vmem [resolvable:$true] %s1448
      %1451 = dma.vmem_to_hbm [thread:$0]  %s1449, 32, %s10, [#allocation7]
    $region45: #{s2_model_forward.1} parent=1 // pred_fallthru
      _
    // Predicated region
    $region46: #{s2_model_forward.1} parent=1 // pred_check
      _
    $region47: #{s2_model_forward.1} parent=1 // pred_check_branch
      %1453 = sbr.rel (0) target = $region49
    $region48: #{s2_model_forward.1} parent=1 // pred_region
      %1454 = dma.done [#allocation7], 32
    $region49: #{s2_model_forward.1} parent=1 // pred_fallthru
      _
    %1455 = vsyncpa [#allocation7], 1

</llo_original>
